<compile_context>
chip_gen: v6e
topology: v6e:2x2x1
jax: 0.10.0
libtpu: 0.0.40
codegen_flags: <defaults>
</compile_context>

<pallas_src>
import functools

import jax
import jax.numpy as jnp
from jax.experimental import pallas as pl
from jax.experimental.pallas import tpu as pltpu

# ---------------- model dims (scaled-down, consistent with the module) -------
B = 2            # batch
T_ENC = 8        # encoder sequence length
T_DEC = 8        # decoder sequence length
EMB = 32         # embedding_dim   (100 in the original, scaled down)
HID = 32         # latent_dim      (256 in the original, scaled down)
V_ENG = 128      # num_words_eng   (10000 in the original, scaled down)
V_KOR = 128      # num_words_kor   (10000 in the original, scaled down)


# ------------------------------ fused kernel ---------------------------------
def _lstm_step(gx, h, c, w_hh):
    """One LSTM step given the precomputed input projection gx = x@W_ih + b.

    PyTorch gate order: i, f, g, o.
    """
    H = h.shape[-1]
    gates = gx + jnp.dot(h, w_hh, preferred_element_type=jnp.float32)  # (BP,4H)
    i = jax.nn.sigmoid(gates[:, 0 * H:1 * H])
    f = jax.nn.sigmoid(gates[:, 1 * H:2 * H])
    g = jnp.tanh(gates[:, 2 * H:3 * H])
    o = jax.nn.sigmoid(gates[:, 3 * H:4 * H])
    c_new = f * c + i * g
    h_new = o * jnp.tanh(c_new)
    return h_new, c_new


def seq2seq_kernel(xe_ref, xd_ref,
                   e_wih_ref, e_whh_ref, e_b_ref,
                   d_wih_ref, d_whh_ref, d_b_ref,
                   wd_ref, bd_ref,
                   out_ref,
                   h_all_scr,
                   *, bp, t_enc, t_dec):
    H = e_whh_ref.shape[0]

    # ---- hoisted input projections: one batched MXU matmul per stage -------
    gx_enc = (jnp.dot(xe_ref[...], e_wih_ref[...],
                      preferred_element_type=jnp.float32)
              + e_b_ref[...])                                  # (Te*BP, 4H)
    gx_dec = (jnp.dot(xd_ref[...], d_wih_ref[...],
                      preferred_element_type=jnp.float32)
              + d_b_ref[...])                                  # (Td*BP, 4H)

    e_whh = e_whh_ref[...]
    d_whh = d_whh_ref[...]

    # ---- encoder recurrence (fully unrolled, sublane-aligned static slices) -
    h = jnp.zeros((bp, H), jnp.float32)
    c = jnp.zeros((bp, H), jnp.float32)
    for t in range(t_enc):
        h, c = _lstm_step(gx_enc[t * bp:(t + 1) * bp, :], h, c, e_whh)

    # ---- decoder recurrence; hidden states collected in VMEM scratch --------
    for t in range(t_dec):
        h, c = _lstm_step(gx_dec[t * bp:(t + 1) * bp, :], h, c, d_whh)
        h_all_scr[t * bp:(t + 1) * bp, :] = h

    # ---- batched dense + softmax over all (t, b) rows -----------------------
    logits = (jnp.dot(h_all_scr[...], wd_ref[...],
                      preferred_element_type=jnp.float32)
              + bd_ref[...])                                   # (Td*BP, V)
    m = jnp.max(logits, axis=-1, keepdims=True)
    e = jnp.exp(logits - m)
    out_ref[...] = e / jnp.sum(e, axis=-1, keepdims=True)


# ------------------------------ full forward ---------------------------------
@jax.jit
def seq2seq_forward(encoder_input, decoder_input, params):
    Bb, Te = encoder_input.shape
    _, Td = decoder_input.shape
    E = params["enc_w_ih"].shape[0]
    H = params["enc_w_hh"].shape[0]
    V = params["dense_w"].shape[1]
    BP = max(8, ((Bb + 7) // 8) * 8)          # pad batch to full sublanes

    # Time-major embedding gather straight from the transposed token ids
    # (only the tiny int32 (B, T) array is transposed).  Embedding lookup is a
    # data-dependent gather, kept in the XLA wrapper.
    xe = jnp.take(params["emb_eng"], encoder_input.T, axis=0)   # (Te, B, E)
    xd = jnp.take(params["emb_kor"], decoder_input.T, axis=0)   # (Td, B, E)
    xe = jnp.pad(xe, ((0, 0), (0, BP - Bb), (0, 0))).astype(jnp.float32)
    xd = jnp.pad(xd, ((0, 0), (0, BP - Bb), (0, 0))).astype(jnp.float32)
    xe = xe.reshape(Te * BP, E)
    xd = xd.reshape(Td * BP, E)

    kernel = functools.partial(seq2seq_kernel, bp=BP, t_enc=Te, t_dec=Td)

    out_slab = pl.pallas_call(
        kernel,
        out_shape=jax.ShapeDtypeStruct((Td * BP, V), jnp.float32),
        grid=(1,),
        in_specs=[
            pl.BlockSpec((Te * BP, E), lambda i: (0, 0)),
            pl.BlockSpec((Td * BP, E), lambda i: (0, 0)),
            pl.BlockSpec((E, 4 * H), lambda i: (0, 0)),
            pl.BlockSpec((H, 4 * H), lambda i: (0, 0)),
            pl.BlockSpec((1, 4 * H), lambda i: (0, 0)),
            pl.BlockSpec((E, 4 * H), lambda i: (0, 0)),
            pl.BlockSpec((H, 4 * H), lambda i: (0, 0)),
            pl.BlockSpec((1, 4 * H), lambda i: (0, 0)),
            pl.BlockSpec((H, V), lambda i: (0, 0)),
            pl.BlockSpec((1, V), lambda i: (0, 0)),
        ],
        out_specs=pl.BlockSpec((Td * BP, V), lambda i: (0, 0)),
        scratch_shapes=[pltpu.VMEM((Td * BP, H), jnp.float32)],
        compiler_params=pltpu.CompilerParams(
            dimension_semantics=("arbitrary",),
            vmem_limit_bytes=32 * 1024 * 1024),
    )(xe, xd,
      params["enc_w_ih"], params["enc_w_hh"], params["enc_b"],
      params["dec_w_ih"], params["dec_w_hh"], params["dec_b"],
      params["dense_w"], params["dense_b"])

    # (Td*BP, V) time-major slab -> drop padded rows -> batch-first (B, Td, V)
    out = out_slab.reshape(Td, BP, V)[:, :Bb, :]
    return jnp.transpose(out, (1, 0, 2))


# ------------------------------ pure-JAX reference ---------------------------
def _lstm_ref(x_bte, w_ih, w_hh, b, h0, c0):
    H = h0.shape[-1]

    def step(carry, x_t):
        h, c = carry
        gates = x_t @ w_ih + h @ w_hh + b[0]
        i = jax.nn.sigmoid(gates[:, :H])
        f = jax.nn.sigmoid(gates[:, H:2 * H])
        g = jnp.tanh(gates[:, 2 * H:3 * H])
        o = jax.nn.sigmoid(gates[:, 3 * H:])
        c = f * c + i * g
        h = o * jnp.tanh(c)
        return (h, c), h

    (h, c), hs = jax.lax.scan(step, (h0, c0), jnp.swapaxes(x_bte, 0, 1))
    return h, c, jnp.swapaxes(hs, 0, 1)


def seq2seq_ref(encoder_input, decoder_input, params):
    x_enc = jnp.take(params["emb_eng"], encoder_input, axis=0)
    h0 = jnp.zeros((encoder_input.shape[0], HID), jnp.float32)
    c0 = jnp.zeros_like(h0)
    h, c, _ = _lstm_ref(x_enc, params["enc_w_ih"], params["enc_w_hh"],
                        params["enc_b"], h0, c0)
    x_dec = jnp.take(params["emb_kor"], decoder_input, axis=0)
    _, _, hs = _lstm_ref(x_dec, params["dec_w_ih"], params["dec_w_hh"],
                         params["dec_b"], h, c)
    logits = hs @ params["dense_w"] + params["dense_b"][0]
    return jax.nn.softmax(logits, axis=-1)


# ------------------------------ main ------------------------------------------
if __name__ == "__main__":
    key = jax.random.PRNGKey(0)
    ks = jax.random.split(key, 12)

    def init(k, shape, scale=0.1):
        return (scale * jax.random.normal(k, shape)).astype(jnp.float32)

    params = {
        # encoder (embedding_matrix analogue: deterministic random init)
        "emb_eng": init(ks[0], (V_ENG, EMB), 1.0),
        "enc_w_ih": init(ks[1], (EMB, 4 * HID)),
        "enc_w_hh": init(ks[2], (HID, 4 * HID)),
        "enc_b": init(ks[3], (1, 4 * HID)),      # b_ih + b_hh folded together
        # decoder
        "emb_kor": init(ks[4], (V_KOR, EMB), 1.0),
        "dec_w_ih": init(ks[5], (EMB, 4 * HID)),
        "dec_w_hh": init(ks[6], (HID, 4 * HID)),
        "dec_b": init(ks[7], (1, 4 * HID)),
        "dense_w": init(ks[8], (HID, V_KOR)),
        "dense_b": init(ks[9], (1, V_KOR)),
    }

    encoder_input = jax.random.randint(ks[10], (B, T_ENC), 0, V_ENG,
                                       dtype=jnp.int32)
    decoder_input = jax.random.randint(ks[11], (B, T_DEC), 0, V_KOR,
                                       dtype=jnp.int32)

    out = seq2seq_forward(encoder_input, decoder_input, params)
    out = jax.block_until_ready(out)

    ref = seq2seq_ref(encoder_input, decoder_input, params)
    assert out.shape == (B, T_DEC, V_KOR), out.shape
    assert jnp.allclose(out, ref, atol=1e-5, rtol=1e-5), float(
        jnp.max(jnp.abs(out - ref)))

    print("KERNEL_OK")
</pallas_src>

<mosaic_0001>
module attributes {stable_mosaic.version = 11 : i64} {
  func.func @seq2seq_kernel(%arg0: i32, %arg1: memref<64x32xf32, #tpu.memory_space<vmem>>, %arg2: memref<64x32xf32, #tpu.memory_space<vmem>>, %arg3: memref<32x128xf32, #tpu.memory_space<vmem>>, %arg4: memref<32x128xf32, #tpu.memory_space<vmem>>, %arg5: memref<1x128xf32, #tpu.memory_space<vmem>>, %arg6: memref<32x128xf32, #tpu.memory_space<vmem>>, %arg7: memref<32x128xf32, #tpu.memory_space<vmem>>, %arg8: memref<1x128xf32, #tpu.memory_space<vmem>>, %arg9: memref<32x128xf32, #tpu.memory_space<vmem>>, %arg10: memref<1x128xf32, #tpu.memory_space<vmem>>, %arg11: memref<64x128xf32, #tpu.memory_space<vmem>>, %arg12: memref<64x32xf32, #tpu.memory_space<vmem>>) attributes {dimension_semantics = [#tpu.dimension_semantics<arbitrary>], iteration_bounds = array<i64: 1>, scalar_prefetch = 0 : i64, scratch_operands = 1 : i64, tpu.core_type = #tpu.core_type<tc>, window_params = [{pipeline_mode = #tpu.pipeline_mode<synchronous>, transform_indices = @transform_0, window_bounds = array<i64: 64, 32>}, {pipeline_mode = #tpu.pipeline_mode<synchronous>, transform_indices = @transform_1, window_bounds = array<i64: 64, 32>}, {pipeline_mode = #tpu.pipeline_mode<synchronous>, transform_indices = @transform_2, window_bounds = array<i64: 32, 128>}, {pipeline_mode = #tpu.pipeline_mode<synchronous>, transform_indices = @transform_3, window_bounds = array<i64: 32, 128>}, {pipeline_mode = #tpu.pipeline_mode<synchronous>, transform_indices = @transform_4, window_bounds = array<i64: 1, 128>}, {pipeline_mode = #tpu.pipeline_mode<synchronous>, transform_indices = @transform_5, window_bounds = array<i64: 32, 128>}, {pipeline_mode = #tpu.pipeline_mode<synchronous>, transform_indices = @transform_6, window_bounds = array<i64: 32, 128>}, {pipeline_mode = #tpu.pipeline_mode<synchronous>, transform_indices = @transform_7, window_bounds = array<i64: 1, 128>}, {pipeline_mode = #tpu.pipeline_mode<synchronous>, transform_indices = @transform_8, window_bounds = array<i64: 32, 128>}, {pipeline_mode = #tpu.pipeline_mode<synchronous>, transform_indices = @transform_9, window_bounds = array<i64: 1, 128>}, {pipeline_mode = #tpu.pipeline_mode<synchronous>, transform_indices = @transform_10, window_bounds = array<i64: 64, 128>}]} {
    %c0 = arith.constant 0 : index
    %c0_0 = arith.constant 0 : index
    %0 = vector.load %arg1[%c0, %c0_0] : memref<64x32xf32, #tpu.memory_space<vmem>>, vector<64x32xf32>
    %c0_1 = arith.constant 0 : index
    %c0_2 = arith.constant 0 : index
    %1 = vector.load %arg3[%c0_1, %c0_2] : memref<32x128xf32, #tpu.memory_space<vmem>>, vector<32x128xf32>
    %cst = arith.constant dense<0.000000e+00> : vector<64x128xf32>
    %2 = tpu.matmul %0, %1, %cst {dimension_numbers = #tpu.dot_dimension_numbers<[1], [0], [0], [1], [0, 0, 1, 1], [], []>} : vector<64x32xf32>, vector<32x128xf32>, vector<64x128xf32> -> vector<64x128xf32>
    %c0_3 = arith.constant 0 : index
    %c0_4 = arith.constant 0 : index
    %3 = vector.load %arg5[%c0_3, %c0_4] : memref<1x128xf32, #tpu.memory_space<vmem>>, vector<1x128xf32>
    %4 = vector.broadcast %3 : vector<1x128xf32> to vector<64x128xf32>
    %5 = arith.addf %2, %4 : vector<64x128xf32>
    %c0_5 = arith.constant 0 : index
    %c0_6 = arith.constant 0 : index
    %6 = vector.load %arg2[%c0_5, %c0_6] : memref<64x32xf32, #tpu.memory_space<vmem>>, vector<64x32xf32>
    %c0_7 = arith.constant 0 : index
    %c0_8 = arith.constant 0 : index
    %7 = vector.load %arg6[%c0_7, %c0_8] : memref<32x128xf32, #tpu.memory_space<vmem>>, vector<32x128xf32>
    %cst_9 = arith.constant dense<0.000000e+00> : vector<64x128xf32>
    %8 = tpu.matmul %6, %7, %cst_9 {dimension_numbers = #tpu.dot_dimension_numbers<[1], [0], [0], [1], [0, 0, 1, 1], [], []>} : vector<64x32xf32>, vector<32x128xf32>, vector<64x128xf32> -> vector<64x128xf32>
    %c0_10 = arith.constant 0 : index
    %c0_11 = arith.constant 0 : index
    %9 = vector.load %arg8[%c0_10, %c0_11] : memref<1x128xf32, #tpu.memory_space<vmem>>, vector<1x128xf32>
    %10 = vector.broadcast %9 : vector<1x128xf32> to vector<64x128xf32>
    %11 = arith.addf %8, %10 : vector<64x128xf32>
    %c0_12 = arith.constant 0 : index
    %c0_13 = arith.constant 0 : index
    %12 = vector.load %arg4[%c0_12, %c0_13] : memref<32x128xf32, #tpu.memory_space<vmem>>, vector<32x128xf32>
    %c0_14 = arith.constant 0 : index
    %c0_15 = arith.constant 0 : index
    %13 = vector.load %arg7[%c0_14, %c0_15] : memref<32x128xf32, #tpu.memory_space<vmem>>, vector<32x128xf32>
    %cst_16 = arith.constant 0.000000e+00 : f32
    %14 = vector.broadcast %cst_16 : f32 to vector<8x32xf32>
    %cst_17 = arith.constant 0.000000e+00 : f32
    %15 = vector.broadcast %cst_17 : f32 to vector<8x32xf32>
    %16 = vector.extract_strided_slice %5 {offsets = [0, 0], sizes = [8, 128], strides = [1, 1]} : vector<64x128xf32> to vector<8x128xf32>
    %cst_18 = arith.constant dense<0.000000e+00> : vector<8x128xf32>
    %17 = tpu.matmul %14, %12, %cst_18 {dimension_numbers = #tpu.dot_dimension_numbers<[1], [0], [0], [1], [0, 0, 1, 1], [], []>} : vector<8x32xf32>, vector<32x128xf32>, vector<8x128xf32> -> vector<8x128xf32>
    %18 = arith.addf %16, %17 : vector<8x128xf32>
    %19 = vector.extract_strided_slice %18 {offsets = [0, 0], sizes = [8, 32], strides = [1, 1]} : vector<8x128xf32> to vector<8x32xf32>
    %20 = arith.negf %19 : vector<8x32xf32>
    %21 = math.exp %20 : vector<8x32xf32>
    %cst_19 = arith.constant 1.000000e+00 : f32
    %22 = vector.broadcast %cst_19 : f32 to vector<8x32xf32>
    %23 = arith.addf %22, %21 : vector<8x32xf32>
    %24 = arith.divf %22, %23 : vector<8x32xf32>
    %25 = vector.extract_strided_slice %18 {offsets = [0, 32], sizes = [8, 32], strides = [1, 1]} : vector<8x128xf32> to vector<8x32xf32>
    %26 = arith.negf %25 : vector<8x32xf32>
    %27 = math.exp %26 : vector<8x32xf32>
    %cst_20 = arith.constant 1.000000e+00 : f32
    %28 = vector.broadcast %cst_20 : f32 to vector<8x32xf32>
    %29 = arith.addf %28, %27 : vector<8x32xf32>
    %30 = arith.divf %28, %29 : vector<8x32xf32>
    %31 = vector.extract_strided_slice %18 {offsets = [0, 64], sizes = [8, 32], strides = [1, 1]} : vector<8x128xf32> to vector<8x32xf32>
    %32 = math.tanh %31 : vector<8x32xf32>
    %33 = vector.extract_strided_slice %18 {offsets = [0, 96], sizes = [8, 32], strides = [1, 1]} : vector<8x128xf32> to vector<8x32xf32>
    %34 = arith.negf %33 : vector<8x32xf32>
    %35 = math.exp %34 : vector<8x32xf32>
    %cst_21 = arith.constant 1.000000e+00 : f32
    %36 = vector.broadcast %cst_21 : f32 to vector<8x32xf32>
    %37 = arith.addf %36, %35 : vector<8x32xf32>
    %38 = arith.divf %36, %37 : vector<8x32xf32>
    %39 = arith.mulf %30, %15 : vector<8x32xf32>
    %40 = arith.mulf %24, %32 : vector<8x32xf32>
    %41 = arith.addf %39, %40 : vector<8x32xf32>
    %42 = math.tanh %41 : vector<8x32xf32>
    %43 = arith.mulf %38, %42 : vector<8x32xf32>
    %44 = vector.extract_strided_slice %5 {offsets = [8, 0], sizes = [8, 128], strides = [1, 1]} : vector<64x128xf32> to vector<8x128xf32>
    %cst_22 = arith.constant dense<0.000000e+00> : vector<8x128xf32>
    %45 = tpu.matmul %43, %12, %cst_22 {dimension_numbers = #tpu.dot_dimension_numbers<[1], [0], [0], [1], [0, 0, 1, 1], [], []>} : vector<8x32xf32>, vector<32x128xf32>, vector<8x128xf32> -> vector<8x128xf32>
    %46 = arith.addf %44, %45 : vector<8x128xf32>
    %47 = vector.extract_strided_slice %46 {offsets = [0, 0], sizes = [8, 32], strides = [1, 1]} : vector<8x128xf32> to vector<8x32xf32>
    %48 = arith.negf %47 : vector<8x32xf32>
    %49 = math.exp %48 : vector<8x32xf32>
    %cst_23 = arith.constant 1.000000e+00 : f32
    %50 = vector.broadcast %cst_23 : f32 to vector<8x32xf32>
    %51 = arith.addf %50, %49 : vector<8x32xf32>
    %52 = arith.divf %50, %51 : vector<8x32xf32>
    %53 = vector.extract_strided_slice %46 {offsets = [0, 32], sizes = [8, 32], strides = [1, 1]} : vector<8x128xf32> to vector<8x32xf32>
    %54 = arith.negf %53 : vector<8x32xf32>
    %55 = math.exp %54 : vector<8x32xf32>
    %cst_24 = arith.constant 1.000000e+00 : f32
    %56 = vector.broadcast %cst_24 : f32 to vector<8x32xf32>
    %57 = arith.addf %56, %55 : vector<8x32xf32>
    %58 = arith.divf %56, %57 : vector<8x32xf32>
    %59 = vector.extract_strided_slice %46 {offsets = [0, 64], sizes = [8, 32], strides = [1, 1]} : vector<8x128xf32> to vector<8x32xf32>
    %60 = math.tanh %59 : vector<8x32xf32>
    %61 = vector.extract_strided_slice %46 {offsets = [0, 96], sizes = [8, 32], strides = [1, 1]} : vector<8x128xf32> to vector<8x32xf32>
    %62 = arith.negf %61 : vector<8x32xf32>
    %63 = math.exp %62 : vector<8x32xf32>
    %cst_25 = arith.constant 1.000000e+00 : f32
    %64 = vector.broadcast %cst_25 : f32 to vector<8x32xf32>
    %65 = arith.addf %64, %63 : vector<8x32xf32>
    %66 = arith.divf %64, %65 : vector<8x32xf32>
    %67 = arith.mulf %58, %41 : vector<8x32xf32>
    %68 = arith.mulf %52, %60 : vector<8x32xf32>
    %69 = arith.addf %67, %68 : vector<8x32xf32>
    %70 = math.tanh %69 : vector<8x32xf32>
    %71 = arith.mulf %66, %70 : vector<8x32xf32>
    %72 = vector.extract_strided_slice %5 {offsets = [16, 0], sizes = [8, 128], strides = [1, 1]} : vector<64x128xf32> to vector<8x128xf32>
    %cst_26 = arith.constant dense<0.000000e+00> : vector<8x128xf32>
    %73 = tpu.matmul %71, %12, %cst_26 {dimension_numbers = #tpu.dot_dimension_numbers<[1], [0], [0], [1], [0, 0, 1, 1], [], []>} : vector<8x32xf32>, vector<32x128xf32>, vector<8x128xf32> -> vector<8x128xf32>
    %74 = arith.addf %72, %73 : vector<8x128xf32>
    %75 = vector.extract_strided_slice %74 {offsets = [0, 0], sizes = [8, 32], strides = [1, 1]} : vector<8x128xf32> to vector<8x32xf32>
    %76 = arith.negf %75 : vector<8x32xf32>
    %77 = math.exp %76 : vector<8x32xf32>
    %cst_27 = arith.constant 1.000000e+00 : f32
    %78 = vector.broadcast %cst_27 : f32 to vector<8x32xf32>
    %79 = arith.addf %78, %77 : vector<8x32xf32>
    %80 = arith.divf %78, %79 : vector<8x32xf32>
    %81 = vector.extract_strided_slice %74 {offsets = [0, 32], sizes = [8, 32], strides = [1, 1]} : vector<8x128xf32> to vector<8x32xf32>
    %82 = arith.negf %81 : vector<8x32xf32>
    %83 = math.exp %82 : vector<8x32xf32>
    %cst_28 = arith.constant 1.000000e+00 : f32
    %84 = vector.broadcast %cst_28 : f32 to vector<8x32xf32>
    %85 = arith.addf %84, %83 : vector<8x32xf32>
    %86 = arith.divf %84, %85 : vector<8x32xf32>
    %87 = vector.extract_strided_slice %74 {offsets = [0, 64], sizes = [8, 32], strides = [1, 1]} : vector<8x128xf32> to vector<8x32xf32>
    %88 = math.tanh %87 : vector<8x32xf32>
    %89 = vector.extract_strided_slice %74 {offsets = [0, 96], sizes = [8, 32], strides = [1, 1]} : vector<8x128xf32> to vector<8x32xf32>
    %90 = arith.negf %89 : vector<8x32xf32>
    %91 = math.exp %90 : vector<8x32xf32>
    %cst_29 = arith.constant 1.000000e+00 : f32
    %92 = vector.broadcast %cst_29 : f32 to vector<8x32xf32>
    %93 = arith.addf %92, %91 : vector<8x32xf32>
    %94 = arith.divf %92, %93 : vector<8x32xf32>
    %95 = arith.mulf %86, %69 : vector<8x32xf32>
    %96 = arith.mulf %80, %88 : vector<8x32xf32>
    %97 = arith.addf %95, %96 : vector<8x32xf32>
    %98 = math.tanh %97 : vector<8x32xf32>
    %99 = arith.mulf %94, %98 : vector<8x32xf32>
    %100 = vector.extract_strided_slice %5 {offsets = [24, 0], sizes = [8, 128], strides = [1, 1]} : vector<64x128xf32> to vector<8x128xf32>
    %cst_30 = arith.constant dense<0.000000e+00> : vector<8x128xf32>
    %101 = tpu.matmul %99, %12, %cst_30 {dimension_numbers = #tpu.dot_dimension_numbers<[1], [0], [0], [1], [0, 0, 1, 1], [], []>} : vector<8x32xf32>, vector<32x128xf32>, vector<8x128xf32> -> vector<8x128xf32>
    %102 = arith.addf %100, %101 : vector<8x128xf32>
    %103 = vector.extract_strided_slice %102 {offsets = [0, 0], sizes = [8, 32], strides = [1, 1]} : vector<8x128xf32> to vector<8x32xf32>
    %104 = arith.negf %103 : vector<8x32xf32>
    %105 = math.exp %104 : vector<8x32xf32>
    %cst_31 = arith.constant 1.000000e+00 : f32
    %106 = vector.broadcast %cst_31 : f32 to vector<8x32xf32>
    %107 = arith.addf %106, %105 : vector<8x32xf32>
    %108 = arith.divf %106, %107 : vector<8x32xf32>
    %109 = vector.extract_strided_slice %102 {offsets = [0, 32], sizes = [8, 32], strides = [1, 1]} : vector<8x128xf32> to vector<8x32xf32>
    %110 = arith.negf %109 : vector<8x32xf32>
    %111 = math.exp %110 : vector<8x32xf32>
    %cst_32 = arith.constant 1.000000e+00 : f32
    %112 = vector.broadcast %cst_32 : f32 to vector<8x32xf32>
    %113 = arith.addf %112, %111 : vector<8x32xf32>
    %114 = arith.divf %112, %113 : vector<8x32xf32>
    %115 = vector.extract_strided_slice %102 {offsets = [0, 64], sizes = [8, 32], strides = [1, 1]} : vector<8x128xf32> to vector<8x32xf32>
    %116 = math.tanh %115 : vector<8x32xf32>
    %117 = vector.extract_strided_slice %102 {offsets = [0, 96], sizes = [8, 32], strides = [1, 1]} : vector<8x128xf32> to vector<8x32xf32>
    %118 = arith.negf %117 : vector<8x32xf32>
    %119 = math.exp %118 : vector<8x32xf32>
    %cst_33 = arith.constant 1.000000e+00 : f32
    %120 = vector.broadcast %cst_33 : f32 to vector<8x32xf32>
    %121 = arith.addf %120, %119 : vector<8x32xf32>
    %122 = arith.divf %120, %121 : vector<8x32xf32>
    %123 = arith.mulf %114, %97 : vector<8x32xf32>
    %124 = arith.mulf %108, %116 : vector<8x32xf32>
    %125 = arith.addf %123, %124 : vector<8x32xf32>
    %126 = math.tanh %125 : vector<8x32xf32>
    %127 = arith.mulf %122, %126 : vector<8x32xf32>
    %128 = vector.extract_strided_slice %5 {offsets = [32, 0], sizes = [8, 128], strides = [1, 1]} : vector<64x128xf32> to vector<8x128xf32>
    %cst_34 = arith.constant dense<0.000000e+00> : vector<8x128xf32>
    %129 = tpu.matmul %127, %12, %cst_34 {dimension_numbers = #tpu.dot_dimension_numbers<[1], [0], [0], [1], [0, 0, 1, 1], [], []>} : vector<8x32xf32>, vector<32x128xf32>, vector<8x128xf32> -> vector<8x128xf32>
    %130 = arith.addf %128, %129 : vector<8x128xf32>
    %131 = vector.extract_strided_slice %130 {offsets = [0, 0], sizes = [8, 32], strides = [1, 1]} : vector<8x128xf32> to vector<8x32xf32>
    %132 = arith.negf %131 : vector<8x32xf32>
    %133 = math.exp %132 : vector<8x32xf32>
    %cst_35 = arith.constant 1.000000e+00 : f32
    %134 = vector.broadcast %cst_35 : f32 to vector<8x32xf32>
    %135 = arith.addf %134, %133 : vector<8x32xf32>
    %136 = arith.divf %134, %135 : vector<8x32xf32>
    %137 = vector.extract_strided_slice %130 {offsets = [0, 32], sizes = [8, 32], strides = [1, 1]} : vector<8x128xf32> to vector<8x32xf32>
    %138 = arith.negf %137 : vector<8x32xf32>
    %139 = math.exp %138 : vector<8x32xf32>
    %cst_36 = arith.constant 1.000000e+00 : f32
    %140 = vector.broadcast %cst_36 : f32 to vector<8x32xf32>
    %141 = arith.addf %140, %139 : vector<8x32xf32>
    %142 = arith.divf %140, %141 : vector<8x32xf32>
    %143 = vector.extract_strided_slice %130 {offsets = [0, 64], sizes = [8, 32], strides = [1, 1]} : vector<8x128xf32> to vector<8x32xf32>
    %144 = math.tanh %143 : vector<8x32xf32>
    %145 = vector.extract_strided_slice %130 {offsets = [0, 96], sizes = [8, 32], strides = [1, 1]} : vector<8x128xf32> to vector<8x32xf32>
    %146 = arith.negf %145 : vector<8x32xf32>
    %147 = math.exp %146 : vector<8x32xf32>
    %cst_37 = arith.constant 1.000000e+00 : f32
    %148 = vector.broadcast %cst_37 : f32 to vector<8x32xf32>
    %149 = arith.addf %148, %147 : vector<8x32xf32>
    %150 = arith.divf %148, %149 : vector<8x32xf32>
    %151 = arith.mulf %142, %125 : vector<8x32xf32>
    %152 = arith.mulf %136, %144 : vector<8x32xf32>
    %153 = arith.addf %151, %152 : vector<8x32xf32>
    %154 = math.tanh %153 : vector<8x32xf32>
    %155 = arith.mulf %150, %154 : vector<8x32xf32>
    %156 = vector.extract_strided_slice %5 {offsets = [40, 0], sizes = [8, 128], strides = [1, 1]} : vector<64x128xf32> to vector<8x128xf32>
    %cst_38 = arith.constant dense<0.000000e+00> : vector<8x128xf32>
    %157 = tpu.matmul %155, %12, %cst_38 {dimension_numbers = #tpu.dot_dimension_numbers<[1], [0], [0], [1], [0, 0, 1, 1], [], []>} : vector<8x32xf32>, vector<32x128xf32>, vector<8x128xf32> -> vector<8x128xf32>
    %158 = arith.addf %156, %157 : vector<8x128xf32>
    %159 = vector.extract_strided_slice %158 {offsets = [0, 0], sizes = [8, 32], strides = [1, 1]} : vector<8x128xf32> to vector<8x32xf32>
    %160 = arith.negf %159 : vector<8x32xf32>
    %161 = math.exp %160 : vector<8x32xf32>
    %cst_39 = arith.constant 1.000000e+00 : f32
    %162 = vector.broadcast %cst_39 : f32 to vector<8x32xf32>
    %163 = arith.addf %162, %161 : vector<8x32xf32>
    %164 = arith.divf %162, %163 : vector<8x32xf32>
    %165 = vector.extract_strided_slice %158 {offsets = [0, 32], sizes = [8, 32], strides = [1, 1]} : vector<8x128xf32> to vector<8x32xf32>
    %166 = arith.negf %165 : vector<8x32xf32>
    %167 = math.exp %166 : vector<8x32xf32>
    %cst_40 = arith.constant 1.000000e+00 : f32
    %168 = vector.broadcast %cst_40 : f32 to vector<8x32xf32>
    %169 = arith.addf %168, %167 : vector<8x32xf32>
    %170 = arith.divf %168, %169 : vector<8x32xf32>
    %171 = vector.extract_strided_slice %158 {offsets = [0, 64], sizes = [8, 32], strides = [1, 1]} : vector<8x128xf32> to vector<8x32xf32>
    %172 = math.tanh %171 : vector<8x32xf32>
    %173 = vector.extract_strided_slice %158 {offsets = [0, 96], sizes = [8, 32], strides = [1, 1]} : vector<8x128xf32> to vector<8x32xf32>
    %174 = arith.negf %173 : vector<8x32xf32>
    %175 = math.exp %174 : vector<8x32xf32>
    %cst_41 = arith.constant 1.000000e+00 : f32
    %176 = vector.broadcast %cst_41 : f32 to vector<8x32xf32>
    %177 = arith.addf %176, %175 : vector<8x32xf32>
    %178 = arith.divf %176, %177 : vector<8x32xf32>
    %179 = arith.mulf %170, %153 : vector<8x32xf32>
    %180 = arith.mulf %164, %172 : vector<8x32xf32>
    %181 = arith.addf %179, %180 : vector<8x32xf32>
    %182 = math.tanh %181 : vector<8x32xf32>
    %183 = arith.mulf %178, %182 : vector<8x32xf32>
    %184 = vector.extract_strided_slice %5 {offsets = [48, 0], sizes = [8, 128], strides = [1, 1]} : vector<64x128xf32> to vector<8x128xf32>
    %cst_42 = arith.constant dense<0.000000e+00> : vector<8x128xf32>
    %185 = tpu.matmul %183, %12, %cst_42 {dimension_numbers = #tpu.dot_dimension_numbers<[1], [0], [0], [1], [0, 0, 1, 1], [], []>} : vector<8x32xf32>, vector<32x128xf32>, vector<8x128xf32> -> vector<8x128xf32>
    %186 = arith.addf %184, %185 : vector<8x128xf32>
    %187 = vector.extract_strided_slice %186 {offsets = [0, 0], sizes = [8, 32], strides = [1, 1]} : vector<8x128xf32> to vector<8x32xf32>
    %188 = arith.negf %187 : vector<8x32xf32>
    %189 = math.exp %188 : vector<8x32xf32>
    %cst_43 = arith.constant 1.000000e+00 : f32
    %190 = vector.broadcast %cst_43 : f32 to vector<8x32xf32>
    %191 = arith.addf %190, %189 : vector<8x32xf32>
    %192 = arith.divf %190, %191 : vector<8x32xf32>
    %193 = vector.extract_strided_slice %186 {offsets = [0, 32], sizes = [8, 32], strides = [1, 1]} : vector<8x128xf32> to vector<8x32xf32>
    %194 = arith.negf %193 : vector<8x32xf32>
    %195 = math.exp %194 : vector<8x32xf32>
    %cst_44 = arith.constant 1.000000e+00 : f32
    %196 = vector.broadcast %cst_44 : f32 to vector<8x32xf32>
    %197 = arith.addf %196, %195 : vector<8x32xf32>
    %198 = arith.divf %196, %197 : vector<8x32xf32>
    %199 = vector.extract_strided_slice %186 {offsets = [0, 64], sizes = [8, 32], strides = [1, 1]} : vector<8x128xf32> to vector<8x32xf32>
    %200 = math.tanh %199 : vector<8x32xf32>
    %201 = vector.extract_strided_slice %186 {offsets = [0, 96], sizes = [8, 32], strides = [1, 1]} : vector<8x128xf32> to vector<8x32xf32>
    %202 = arith.negf %201 : vector<8x32xf32>
    %203 = math.exp %202 : vector<8x32xf32>
    %cst_45 = arith.constant 1.000000e+00 : f32
    %204 = vector.broadcast %cst_45 : f32 to vector<8x32xf32>
    %205 = arith.addf %204, %203 : vector<8x32xf32>
    %206 = arith.divf %204, %205 : vector<8x32xf32>
    %207 = arith.mulf %198, %181 : vector<8x32xf32>
    %208 = arith.mulf %192, %200 : vector<8x32xf32>
    %209 = arith.addf %207, %208 : vector<8x32xf32>
    %210 = math.tanh %209 : vector<8x32xf32>
    %211 = arith.mulf %206, %210 : vector<8x32xf32>
    %212 = vector.extract_strided_slice %5 {offsets = [56, 0], sizes = [8, 128], strides = [1, 1]} : vector<64x128xf32> to vector<8x128xf32>
    %cst_46 = arith.constant dense<0.000000e+00> : vector<8x128xf32>
    %213 = tpu.matmul %211, %12, %cst_46 {dimension_numbers = #tpu.dot_dimension_numbers<[1], [0], [0], [1], [0, 0, 1, 1], [], []>} : vector<8x32xf32>, vector<32x128xf32>, vector<8x128xf32> -> vector<8x128xf32>
    %214 = arith.addf %212, %213 : vector<8x128xf32>
    %215 = vector.extract_strided_slice %214 {offsets = [0, 0], sizes = [8, 32], strides = [1, 1]} : vector<8x128xf32> to vector<8x32xf32>
    %216 = arith.negf %215 : vector<8x32xf32>
    %217 = math.exp %216 : vector<8x32xf32>
    %cst_47 = arith.constant 1.000000e+00 : f32
    %218 = vector.broadcast %cst_47 : f32 to vector<8x32xf32>
    %219 = arith.addf %218, %217 : vector<8x32xf32>
    %220 = arith.divf %218, %219 : vector<8x32xf32>
    %221 = vector.extract_strided_slice %214 {offsets = [0, 32], sizes = [8, 32], strides = [1, 1]} : vector<8x128xf32> to vector<8x32xf32>
    %222 = arith.negf %221 : vector<8x32xf32>
    %223 = math.exp %222 : vector<8x32xf32>
    %cst_48 = arith.constant 1.000000e+00 : f32
    %224 = vector.broadcast %cst_48 : f32 to vector<8x32xf32>
    %225 = arith.addf %224, %223 : vector<8x32xf32>
    %226 = arith.divf %224, %225 : vector<8x32xf32>
    %227 = vector.extract_strided_slice %214 {offsets = [0, 64], sizes = [8, 32], strides = [1, 1]} : vector<8x128xf32> to vector<8x32xf32>
    %228 = math.tanh %227 : vector<8x32xf32>
    %229 = vector.extract_strided_slice %214 {offsets = [0, 96], sizes = [8, 32], strides = [1, 1]} : vector<8x128xf32> to vector<8x32xf32>
    %230 = arith.negf %229 : vector<8x32xf32>
    %231 = math.exp %230 : vector<8x32xf32>
    %cst_49 = arith.constant 1.000000e+00 : f32
    %232 = vector.broadcast %cst_49 : f32 to vector<8x32xf32>
    %233 = arith.addf %232, %231 : vector<8x32xf32>
    %234 = arith.divf %232, %233 : vector<8x32xf32>
    %235 = arith.mulf %226, %209 : vector<8x32xf32>
    %236 = arith.mulf %220, %228 : vector<8x32xf32>
    %237 = arith.addf %235, %236 : vector<8x32xf32>
    %238 = math.tanh %237 : vector<8x32xf32>
    %239 = arith.mulf %234, %238 : vector<8x32xf32>
    %240 = vector.extract_strided_slice %11 {offsets = [0, 0], sizes = [8, 128], strides = [1, 1]} : vector<64x128xf32> to vector<8x128xf32>
    %cst_50 = arith.constant dense<0.000000e+00> : vector<8x128xf32>
    %241 = tpu.matmul %239, %13, %cst_50 {dimension_numbers = #tpu.dot_dimension_numbers<[1], [0], [0], [1], [0, 0, 1, 1], [], []>} : vector<8x32xf32>, vector<32x128xf32>, vector<8x128xf32> -> vector<8x128xf32>
    %242 = arith.addf %240, %241 : vector<8x128xf32>
    %243 = vector.extract_strided_slice %242 {offsets = [0, 0], sizes = [8, 32], strides = [1, 1]} : vector<8x128xf32> to vector<8x32xf32>
    %244 = arith.negf %243 : vector<8x32xf32>
    %245 = math.exp %244 : vector<8x32xf32>
    %cst_51 = arith.constant 1.000000e+00 : f32
    %246 = vector.broadcast %cst_51 : f32 to vector<8x32xf32>
    %247 = arith.addf %246, %245 : vector<8x32xf32>
    %248 = arith.divf %246, %247 : vector<8x32xf32>
    %249 = vector.extract_strided_slice %242 {offsets = [0, 32], sizes = [8, 32], strides = [1, 1]} : vector<8x128xf32> to vector<8x32xf32>
    %250 = arith.negf %249 : vector<8x32xf32>
    %251 = math.exp %250 : vector<8x32xf32>
    %cst_52 = arith.constant 1.000000e+00 : f32
    %252 = vector.broadcast %cst_52 : f32 to vector<8x32xf32>
    %253 = arith.addf %252, %251 : vector<8x32xf32>
    %254 = arith.divf %252, %253 : vector<8x32xf32>
    %255 = vector.extract_strided_slice %242 {offsets = [0, 64], sizes = [8, 32], strides = [1, 1]} : vector<8x128xf32> to vector<8x32xf32>
    %256 = math.tanh %255 : vector<8x32xf32>
    %257 = vector.extract_strided_slice %242 {offsets = [0, 96], sizes = [8, 32], strides = [1, 1]} : vector<8x128xf32> to vector<8x32xf32>
    %258 = arith.negf %257 : vector<8x32xf32>
    %259 = math.exp %258 : vector<8x32xf32>
    %cst_53 = arith.constant 1.000000e+00 : f32
    %260 = vector.broadcast %cst_53 : f32 to vector<8x32xf32>
    %261 = arith.addf %260, %259 : vector<8x32xf32>
    %262 = arith.divf %260, %261 : vector<8x32xf32>
    %263 = arith.mulf %254, %237 : vector<8x32xf32>
    %264 = arith.mulf %248, %256 : vector<8x32xf32>
    %265 = arith.addf %263, %264 : vector<8x32xf32>
    %266 = math.tanh %265 : vector<8x32xf32>
    %267 = arith.mulf %262, %266 : vector<8x32xf32>
    %c0_54 = arith.constant 0 : index
    %c0_55 = arith.constant 0 : index
    %268 = vector.load %arg12[%c0_54, %c0_55] : memref<64x32xf32, #tpu.memory_space<vmem>>, vector<8x32xf32>
    tpu.vector_store %arg12[%c0_54, %c0_55], %267 {strides = array<i32>} : memref<64x32xf32, #tpu.memory_space<vmem>>, vector<8x32xf32>,
    %269 = vector.extract_strided_slice %11 {offsets = [8, 0], sizes = [8, 128], strides = [1, 1]} : vector<64x128xf32> to vector<8x128xf32>
    %cst_56 = arith.constant dense<0.000000e+00> : vector<8x128xf32>
    %270 = tpu.matmul %267, %13, %cst_56 {dimension_numbers = #tpu.dot_dimension_numbers<[1], [0], [0], [1], [0, 0, 1, 1], [], []>} : vector<8x32xf32>, vector<32x128xf32>, vector<8x128xf32> -> vector<8x128xf32>
    %271 = arith.addf %269, %270 : vector<8x128xf32>
    %272 = vector.extract_strided_slice %271 {offsets = [0, 0], sizes = [8, 32], strides = [1, 1]} : vector<8x128xf32> to vector<8x32xf32>
    %273 = arith.negf %272 : vector<8x32xf32>
    %274 = math.exp %273 : vector<8x32xf32>
    %cst_57 = arith.constant 1.000000e+00 : f32
    %275 = vector.broadcast %cst_57 : f32 to vector<8x32xf32>
    %276 = arith.addf %275, %274 : vector<8x32xf32>
    %277 = arith.divf %275, %276 : vector<8x32xf32>
    %278 = vector.extract_strided_slice %271 {offsets = [0, 32], sizes = [8, 32], strides = [1, 1]} : vector<8x128xf32> to vector<8x32xf32>
    %279 = arith.negf %278 : vector<8x32xf32>
    %280 = math.exp %279 : vector<8x32xf32>
    %cst_58 = arith.constant 1.000000e+00 : f32
    %281 = vector.broadcast %cst_58 : f32 to vector<8x32xf32>
    %282 = arith.addf %281, %280 : vector<8x32xf32>
    %283 = arith.divf %281, %282 : vector<8x32xf32>
    %284 = vector.extract_strided_slice %271 {offsets = [0, 64], sizes = [8, 32], strides = [1, 1]} : vector<8x128xf32> to vector<8x32xf32>
    %285 = math.tanh %284 : vector<8x32xf32>
    %286 = vector.extract_strided_slice %271 {offsets = [0, 96], sizes = [8, 32], strides = [1, 1]} : vector<8x128xf32> to vector<8x32xf32>
    %287 = arith.negf %286 : vector<8x32xf32>
    %288 = math.exp %287 : vector<8x32xf32>
    %cst_59 = arith.constant 1.000000e+00 : f32
    %289 = vector.broadcast %cst_59 : f32 to vector<8x32xf32>
    %290 = arith.addf %289, %288 : vector<8x32xf32>
    %291 = arith.divf %289, %290 : vector<8x32xf32>
    %292 = arith.mulf %283, %265 : vector<8x32xf32>
    %293 = arith.mulf %277, %285 : vector<8x32xf32>
    %294 = arith.addf %292, %293 : vector<8x32xf32>
    %295 = math.tanh %294 : vector<8x32xf32>
    %296 = arith.mulf %291, %295 : vector<8x32xf32>
    %c8 = arith.constant 8 : index
    %c0_60 = arith.constant 0 : index
    %297 = vector.load %arg12[%c8, %c0_60] : memref<64x32xf32, #tpu.memory_space<vmem>>, vector<8x32xf32>
    tpu.vector_store %arg12[%c8, %c0_60], %296 {strides = array<i32>} : memref<64x32xf32, #tpu.memory_space<vmem>>, vector<8x32xf32>,
    %298 = vector.extract_strided_slice %11 {offsets = [16, 0], sizes = [8, 128], strides = [1, 1]} : vector<64x128xf32> to vector<8x128xf32>
    %cst_61 = arith.constant dense<0.000000e+00> : vector<8x128xf32>
    %299 = tpu.matmul %296, %13, %cst_61 {dimension_numbers = #tpu.dot_dimension_numbers<[1], [0], [0], [1], [0, 0, 1, 1], [], []>} : vector<8x32xf32>, vector<32x128xf32>, vector<8x128xf32> -> vector<8x128xf32>
    %300 = arith.addf %298, %299 : vector<8x128xf32>
    %301 = vector.extract_strided_slice %300 {offsets = [0, 0], sizes = [8, 32], strides = [1, 1]} : vector<8x128xf32> to vector<8x32xf32>
    %302 = arith.negf %301 : vector<8x32xf32>
    %303 = math.exp %302 : vector<8x32xf32>
    %cst_62 = arith.constant 1.000000e+00 : f32
    %304 = vector.broadcast %cst_62 : f32 to vector<8x32xf32>
    %305 = arith.addf %304, %303 : vector<8x32xf32>
    %306 = arith.divf %304, %305 : vector<8x32xf32>
    %307 = vector.extract_strided_slice %300 {offsets = [0, 32], sizes = [8, 32], strides = [1, 1]} : vector<8x128xf32> to vector<8x32xf32>
    %308 = arith.negf %307 : vector<8x32xf32>
    %309 = math.exp %308 : vector<8x32xf32>
    %cst_63 = arith.constant 1.000000e+00 : f32
    %310 = vector.broadcast %cst_63 : f32 to vector<8x32xf32>
    %311 = arith.addf %310, %309 : vector<8x32xf32>
    %312 = arith.divf %310, %311 : vector<8x32xf32>
    %313 = vector.extract_strided_slice %300 {offsets = [0, 64], sizes = [8, 32], strides = [1, 1]} : vector<8x128xf32> to vector<8x32xf32>
    %314 = math.tanh %313 : vector<8x32xf32>
    %315 = vector.extract_strided_slice %300 {offsets = [0, 96], sizes = [8, 32], strides = [1, 1]} : vector<8x128xf32> to vector<8x32xf32>
    %316 = arith.negf %315 : vector<8x32xf32>
    %317 = math.exp %316 : vector<8x32xf32>
    %cst_64 = arith.constant 1.000000e+00 : f32
    %318 = vector.broadcast %cst_64 : f32 to vector<8x32xf32>
    %319 = arith.addf %318, %317 : vector<8x32xf32>
    %320 = arith.divf %318, %319 : vector<8x32xf32>
    %321 = arith.mulf %312, %294 : vector<8x32xf32>
    %322 = arith.mulf %306, %314 : vector<8x32xf32>
    %323 = arith.addf %321, %322 : vector<8x32xf32>
    %324 = math.tanh %323 : vector<8x32xf32>
    %325 = arith.mulf %320, %324 : vector<8x32xf32>
    %c16 = arith.constant 16 : index
    %c0_65 = arith.constant 0 : index
    %326 = vector.load %arg12[%c16, %c0_65] : memref<64x32xf32, #tpu.memory_space<vmem>>, vector<8x32xf32>
    tpu.vector_store %arg12[%c16, %c0_65], %325 {strides = array<i32>} : memref<64x32xf32, #tpu.memory_space<vmem>>, vector<8x32xf32>,
    %327 = vector.extract_strided_slice %11 {offsets = [24, 0], sizes = [8, 128], strides = [1, 1]} : vector<64x128xf32> to vector<8x128xf32>
    %cst_66 = arith.constant dense<0.000000e+00> : vector<8x128xf32>
    %328 = tpu.matmul %325, %13, %cst_66 {dimension_numbers = #tpu.dot_dimension_numbers<[1], [0], [0], [1], [0, 0, 1, 1], [], []>} : vector<8x32xf32>, vector<32x128xf32>, vector<8x128xf32> -> vector<8x128xf32>
    %329 = arith.addf %327, %328 : vector<8x128xf32>
    %330 = vector.extract_strided_slice %329 {offsets = [0, 0], sizes = [8, 32], strides = [1, 1]} : vector<8x128xf32> to vector<8x32xf32>
    %331 = arith.negf %330 : vector<8x32xf32>
    %332 = math.exp %331 : vector<8x32xf32>
    %cst_67 = arith.constant 1.000000e+00 : f32
    %333 = vector.broadcast %cst_67 : f32 to vector<8x32xf32>
    %334 = arith.addf %333, %332 : vector<8x32xf32>
    %335 = arith.divf %333, %334 : vector<8x32xf32>
    %336 = vector.extract_strided_slice %329 {offsets = [0, 32], sizes = [8, 32], strides = [1, 1]} : vector<8x128xf32> to vector<8x32xf32>
    %337 = arith.negf %336 : vector<8x32xf32>
    %338 = math.exp %337 : vector<8x32xf32>
    %cst_68 = arith.constant 1.000000e+00 : f32
    %339 = vector.broadcast %cst_68 : f32 to vector<8x32xf32>
    %340 = arith.addf %339, %338 : vector<8x32xf32>
    %341 = arith.divf %339, %340 : vector<8x32xf32>
    %342 = vector.extract_strided_slice %329 {offsets = [0, 64], sizes = [8, 32], strides = [1, 1]} : vector<8x128xf32> to vector<8x32xf32>
    %343 = math.tanh %342 : vector<8x32xf32>
    %344 = vector.extract_strided_slice %329 {offsets = [0, 96], sizes = [8, 32], strides = [1, 1]} : vector<8x128xf32> to vector<8x32xf32>
    %345 = arith.negf %344 : vector<8x32xf32>
    %346 = math.exp %345 : vector<8x32xf32>
    %cst_69 = arith.constant 1.000000e+00 : f32
    %347 = vector.broadcast %cst_69 : f32 to vector<8x32xf32>
    %348 = arith.addf %347, %346 : vector<8x32xf32>
    %349 = arith.divf %347, %348 : vector<8x32xf32>
    %350 = arith.mulf %341, %323 : vector<8x32xf32>
    %351 = arith.mulf %335, %343 : vector<8x32xf32>
    %352 = arith.addf %350, %351 : vector<8x32xf32>
    %353 = math.tanh %352 : vector<8x32xf32>
    %354 = arith.mulf %349, %353 : vector<8x32xf32>
    %c24 = arith.constant 24 : index
    %c0_70 = arith.constant 0 : index
    %355 = vector.load %arg12[%c24, %c0_70] : memref<64x32xf32, #tpu.memory_space<vmem>>, vector<8x32xf32>
    tpu.vector_store %arg12[%c24, %c0_70], %354 {strides = array<i32>} : memref<64x32xf32, #tpu.memory_space<vmem>>, vector<8x32xf32>,
    %356 = vector.extract_strided_slice %11 {offsets = [32, 0], sizes = [8, 128], strides = [1, 1]} : vector<64x128xf32> to vector<8x128xf32>
    %cst_71 = arith.constant dense<0.000000e+00> : vector<8x128xf32>
    %357 = tpu.matmul %354, %13, %cst_71 {dimension_numbers = #tpu.dot_dimension_numbers<[1], [0], [0], [1], [0, 0, 1, 1], [], []>} : vector<8x32xf32>, vector<32x128xf32>, vector<8x128xf32> -> vector<8x128xf32>
    %358 = arith.addf %356, %357 : vector<8x128xf32>
    %359 = vector.extract_strided_slice %358 {offsets = [0, 0], sizes = [8, 32], strides = [1, 1]} : vector<8x128xf32> to vector<8x32xf32>
    %360 = arith.negf %359 : vector<8x32xf32>
    %361 = math.exp %360 : vector<8x32xf32>
    %cst_72 = arith.constant 1.000000e+00 : f32
    %362 = vector.broadcast %cst_72 : f32 to vector<8x32xf32>
    %363 = arith.addf %362, %361 : vector<8x32xf32>
    %364 = arith.divf %362, %363 : vector<8x32xf32>
    %365 = vector.extract_strided_slice %358 {offsets = [0, 32], sizes = [8, 32], strides = [1, 1]} : vector<8x128xf32> to vector<8x32xf32>
    %366 = arith.negf %365 : vector<8x32xf32>
    %367 = math.exp %366 : vector<8x32xf32>
    %cst_73 = arith.constant 1.000000e+00 : f32
    %368 = vector.broadcast %cst_73 : f32 to vector<8x32xf32>
    %369 = arith.addf %368, %367 : vector<8x32xf32>
    %370 = arith.divf %368, %369 : vector<8x32xf32>
    %371 = vector.extract_strided_slice %358 {offsets = [0, 64], sizes = [8, 32], strides = [1, 1]} : vector<8x128xf32> to vector<8x32xf32>
    %372 = math.tanh %371 : vector<8x32xf32>
    %373 = vector.extract_strided_slice %358 {offsets = [0, 96], sizes = [8, 32], strides = [1, 1]} : vector<8x128xf32> to vector<8x32xf32>
    %374 = arith.negf %373 : vector<8x32xf32>
    %375 = math.exp %374 : vector<8x32xf32>
    %cst_74 = arith.constant 1.000000e+00 : f32
    %376 = vector.broadcast %cst_74 : f32 to vector<8x32xf32>
    %377 = arith.addf %376, %375 : vector<8x32xf32>
    %378 = arith.divf %376, %377 : vector<8x32xf32>
    %379 = arith.mulf %370, %352 : vector<8x32xf32>
    %380 = arith.mulf %364, %372 : vector<8x32xf32>
    %381 = arith.addf %379, %380 : vector<8x32xf32>
    %382 = math.tanh %381 : vector<8x32xf32>
    %383 = arith.mulf %378, %382 : vector<8x32xf32>
    %c32 = arith.constant 32 : index
    %c0_75 = arith.constant 0 : index
    %384 = vector.load %arg12[%c32, %c0_75] : memref<64x32xf32, #tpu.memory_space<vmem>>, vector<8x32xf32>
    tpu.vector_store %arg12[%c32, %c0_75], %383 {strides = array<i32>} : memref<64x32xf32, #tpu.memory_space<vmem>>, vector<8x32xf32>,
    %385 = vector.extract_strided_slice %11 {offsets = [40, 0], sizes = [8, 128], strides = [1, 1]} : vector<64x128xf32> to vector<8x128xf32>
    %cst_76 = arith.constant dense<0.000000e+00> : vector<8x128xf32>
    %386 = tpu.matmul %383, %13, %cst_76 {dimension_numbers = #tpu.dot_dimension_numbers<[1], [0], [0], [1], [0, 0, 1, 1], [], []>} : vector<8x32xf32>, vector<32x128xf32>, vector<8x128xf32> -> vector<8x128xf32>
    %387 = arith.addf %385, %386 : vector<8x128xf32>
    %388 = vector.extract_strided_slice %387 {offsets = [0, 0], sizes = [8, 32], strides = [1, 1]} : vector<8x128xf32> to vector<8x32xf32>
    %389 = arith.negf %388 : vector<8x32xf32>
    %390 = math.exp %389 : vector<8x32xf32>
    %cst_77 = arith.constant 1.000000e+00 : f32
    %391 = vector.broadcast %cst_77 : f32 to vector<8x32xf32>
    %392 = arith.addf %391, %390 : vector<8x32xf32>
    %393 = arith.divf %391, %392 : vector<8x32xf32>
    %394 = vector.extract_strided_slice %387 {offsets = [0, 32], sizes = [8, 32], strides = [1, 1]} : vector<8x128xf32> to vector<8x32xf32>
    %395 = arith.negf %394 : vector<8x32xf32>
    %396 = math.exp %395 : vector<8x32xf32>
    %cst_78 = arith.constant 1.000000e+00 : f32
    %397 = vector.broadcast %cst_78 : f32 to vector<8x32xf32>
    %398 = arith.addf %397, %396 : vector<8x32xf32>
    %399 = arith.divf %397, %398 : vector<8x32xf32>
    %400 = vector.extract_strided_slice %387 {offsets = [0, 64], sizes = [8, 32], strides = [1, 1]} : vector<8x128xf32> to vector<8x32xf32>
    %401 = math.tanh %400 : vector<8x32xf32>
    %402 = vector.extract_strided_slice %387 {offsets = [0, 96], sizes = [8, 32], strides = [1, 1]} : vector<8x128xf32> to vector<8x32xf32>
    %403 = arith.negf %402 : vector<8x32xf32>
    %404 = math.exp %403 : vector<8x32xf32>
    %cst_79 = arith.constant 1.000000e+00 : f32
    %405 = vector.broadcast %cst_79 : f32 to vector<8x32xf32>
    %406 = arith.addf %405, %404 : vector<8x32xf32>
    %407 = arith.divf %405, %406 : vector<8x32xf32>
    %408 = arith.mulf %399, %381 : vector<8x32xf32>
    %409 = arith.mulf %393, %401 : vector<8x32xf32>
    %410 = arith.addf %408, %409 : vector<8x32xf32>
    %411 = math.tanh %410 : vector<8x32xf32>
    %412 = arith.mulf %407, %411 : vector<8x32xf32>
    %c40 = arith.constant 40 : index
    %c0_80 = arith.constant 0 : index
    %413 = vector.load %arg12[%c40, %c0_80] : memref<64x32xf32, #tpu.memory_space<vmem>>, vector<8x32xf32>
    tpu.vector_store %arg12[%c40, %c0_80], %412 {strides = array<i32>} : memref<64x32xf32, #tpu.memory_space<vmem>>, vector<8x32xf32>,
    %414 = vector.extract_strided_slice %11 {offsets = [48, 0], sizes = [8, 128], strides = [1, 1]} : vector<64x128xf32> to vector<8x128xf32>
    %cst_81 = arith.constant dense<0.000000e+00> : vector<8x128xf32>
    %415 = tpu.matmul %412, %13, %cst_81 {dimension_numbers = #tpu.dot_dimension_numbers<[1], [0], [0], [1], [0, 0, 1, 1], [], []>} : vector<8x32xf32>, vector<32x128xf32>, vector<8x128xf32> -> vector<8x128xf32>
    %416 = arith.addf %414, %415 : vector<8x128xf32>
    %417 = vector.extract_strided_slice %416 {offsets = [0, 0], sizes = [8, 32], strides = [1, 1]} : vector<8x128xf32> to vector<8x32xf32>
    %418 = arith.negf %417 : vector<8x32xf32>
    %419 = math.exp %418 : vector<8x32xf32>
    %cst_82 = arith.constant 1.000000e+00 : f32
    %420 = vector.broadcast %cst_82 : f32 to vector<8x32xf32>
    %421 = arith.addf %420, %419 : vector<8x32xf32>
    %422 = arith.divf %420, %421 : vector<8x32xf32>
    %423 = vector.extract_strided_slice %416 {offsets = [0, 32], sizes = [8, 32], strides = [1, 1]} : vector<8x128xf32> to vector<8x32xf32>
    %424 = arith.negf %423 : vector<8x32xf32>
    %425 = math.exp %424 : vector<8x32xf32>
    %cst_83 = arith.constant 1.000000e+00 : f32
    %426 = vector.broadcast %cst_83 : f32 to vector<8x32xf32>
    %427 = arith.addf %426, %425 : vector<8x32xf32>
    %428 = arith.divf %426, %427 : vector<8x32xf32>
    %429 = vector.extract_strided_slice %416 {offsets = [0, 64], sizes = [8, 32], strides = [1, 1]} : vector<8x128xf32> to vector<8x32xf32>
    %430 = math.tanh %429 : vector<8x32xf32>
    %431 = vector.extract_strided_slice %416 {offsets = [0, 96], sizes = [8, 32], strides = [1, 1]} : vector<8x128xf32> to vector<8x32xf32>
    %432 = arith.negf %431 : vector<8x32xf32>
    %433 = math.exp %432 : vector<8x32xf32>
    %cst_84 = arith.constant 1.000000e+00 : f32
    %434 = vector.broadcast %cst_84 : f32 to vector<8x32xf32>
    %435 = arith.addf %434, %433 : vector<8x32xf32>
    %436 = arith.divf %434, %435 : vector<8x32xf32>
    %437 = arith.mulf %428, %410 : vector<8x32xf32>
    %438 = arith.mulf %422, %430 : vector<8x32xf32>
    %439 = arith.addf %437, %438 : vector<8x32xf32>
    %440 = math.tanh %439 : vector<8x32xf32>
    %441 = arith.mulf %436, %440 : vector<8x32xf32>
    %c48 = arith.constant 48 : index
    %c0_85 = arith.constant 0 : index
    %442 = vector.load %arg12[%c48, %c0_85] : memref<64x32xf32, #tpu.memory_space<vmem>>, vector<8x32xf32>
    tpu.vector_store %arg12[%c48, %c0_85], %441 {strides = array<i32>} : memref<64x32xf32, #tpu.memory_space<vmem>>, vector<8x32xf32>,
    %443 = vector.extract_strided_slice %11 {offsets = [56, 0], sizes = [8, 128], strides = [1, 1]} : vector<64x128xf32> to vector<8x128xf32>
    %cst_86 = arith.constant dense<0.000000e+00> : vector<8x128xf32>
    %444 = tpu.matmul %441, %13, %cst_86 {dimension_numbers = #tpu.dot_dimension_numbers<[1], [0], [0], [1], [0, 0, 1, 1], [], []>} : vector<8x32xf32>, vector<32x128xf32>, vector<8x128xf32> -> vector<8x128xf32>
    %445 = arith.addf %443, %444 : vector<8x128xf32>
    %446 = vector.extract_strided_slice %445 {offsets = [0, 0], sizes = [8, 32], strides = [1, 1]} : vector<8x128xf32> to vector<8x32xf32>
    %447 = arith.negf %446 : vector<8x32xf32>
    %448 = math.exp %447 : vector<8x32xf32>
    %cst_87 = arith.constant 1.000000e+00 : f32
    %449 = vector.broadcast %cst_87 : f32 to vector<8x32xf32>
    %450 = arith.addf %449, %448 : vector<8x32xf32>
    %451 = arith.divf %449, %450 : vector<8x32xf32>
    %452 = vector.extract_strided_slice %445 {offsets = [0, 32], sizes = [8, 32], strides = [1, 1]} : vector<8x128xf32> to vector<8x32xf32>
    %453 = arith.negf %452 : vector<8x32xf32>
    %454 = math.exp %453 : vector<8x32xf32>
    %cst_88 = arith.constant 1.000000e+00 : f32
    %455 = vector.broadcast %cst_88 : f32 to vector<8x32xf32>
    %456 = arith.addf %455, %454 : vector<8x32xf32>
    %457 = arith.divf %455, %456 : vector<8x32xf32>
    %458 = vector.extract_strided_slice %445 {offsets = [0, 64], sizes = [8, 32], strides = [1, 1]} : vector<8x128xf32> to vector<8x32xf32>
    %459 = math.tanh %458 : vector<8x32xf32>
    %460 = vector.extract_strided_slice %445 {offsets = [0, 96], sizes = [8, 32], strides = [1, 1]} : vector<8x128xf32> to vector<8x32xf32>
    %461 = arith.negf %460 : vector<8x32xf32>
    %462 = math.exp %461 : vector<8x32xf32>
    %cst_89 = arith.constant 1.000000e+00 : f32
    %463 = vector.broadcast %cst_89 : f32 to vector<8x32xf32>
    %464 = arith.addf %463, %462 : vector<8x32xf32>
    %465 = arith.divf %463, %464 : vector<8x32xf32>
    %466 = arith.mulf %457, %439 : vector<8x32xf32>
    %467 = arith.mulf %451, %459 : vector<8x32xf32>
    %468 = arith.addf %466, %467 : vector<8x32xf32>
    %469 = math.tanh %468 : vector<8x32xf32>
    %470 = arith.mulf %465, %469 : vector<8x32xf32>
    %c56 = arith.constant 56 : index
    %c0_90 = arith.constant 0 : index
    %471 = vector.load %arg12[%c56, %c0_90] : memref<64x32xf32, #tpu.memory_space<vmem>>, vector<8x32xf32>
    tpu.vector_store %arg12[%c56, %c0_90], %470 {strides = array<i32>} : memref<64x32xf32, #tpu.memory_space<vmem>>, vector<8x32xf32>,
    %c0_91 = arith.constant 0 : index
    %c0_92 = arith.constant 0 : index
    %472 = vector.load %arg12[%c0_91, %c0_92] : memref<64x32xf32, #tpu.memory_space<vmem>>, vector<64x32xf32>
    %c0_93 = arith.constant 0 : index
    %c0_94 = arith.constant 0 : index
    %473 = vector.load %arg9[%c0_93, %c0_94] : memref<32x128xf32, #tpu.memory_space<vmem>>, vector<32x128xf32>
    %cst_95 = arith.constant dense<0.000000e+00> : vector<64x128xf32>
    %474 = tpu.matmul %472, %473, %cst_95 {dimension_numbers = #tpu.dot_dimension_numbers<[1], [0], [0], [1], [0, 0, 1, 1], [], []>} : vector<64x32xf32>, vector<32x128xf32>, vector<64x128xf32> -> vector<64x128xf32>
    %c0_96 = arith.constant 0 : index
    %c0_97 = arith.constant 0 : index
    %475 = vector.load %arg10[%c0_96, %c0_97] : memref<1x128xf32, #tpu.memory_space<vmem>>, vector<1x128xf32>
    %476 = vector.broadcast %475 : vector<1x128xf32> to vector<64x128xf32>
    %477 = arith.addf %474, %476 : vector<64x128xf32>
    %cst_98 = arith.constant dense<0xFF800000> : vector<64xf32>
    %478 = vector.multi_reduction <maximumf>, %477, %cst_98 [1] : vector<64x128xf32> to vector<64xf32>
    %479 = vector.shape_cast %478 : vector<64xf32> to vector<64x1xf32>
    %480 = vector.broadcast %479 : vector<64x1xf32> to vector<64x128xf32>
    %481 = arith.subf %477, %480 : vector<64x128xf32>
    %482 = math.exp %481 : vector<64x128xf32>
    %cst_99 = arith.constant dense<0.000000e+00> : vector<64xf32>
    %483 = vector.multi_reduction <add>, %482, %cst_99 [1] : vector<64x128xf32> to vector<64xf32>
    %484 = vector.shape_cast %483 : vector<64xf32> to vector<64x1xf32>
    %485 = vector.broadcast %484 : vector<64x1xf32> to vector<64x128xf32>
    %486 = arith.divf %482, %485 : vector<64x128xf32>
    %c0_100 = arith.constant 0 : index
    %c0_101 = arith.constant 0 : index
    %487 = vector.load %arg11[%c0_100, %c0_101] : memref<64x128xf32, #tpu.memory_space<vmem>>, vector<64x128xf32>
    tpu.vector_store %arg11[%c0_100, %c0_101], %486 {strides = array<i32>} : memref<64x128xf32, #tpu.memory_space<vmem>>, vector<64x128xf32>,
    return
  }
  func.func @transform_0(%arg0: i32) -> (i32, i32) {
    %c0_i32 = arith.constant 0 : i32
    %c0_i32_0 = arith.constant 0 : i32
    %c0_i32_1 = arith.constant 0 : i32
    return %c0_i32, %c0_i32_0 : i32, i32
  }
  func.func @transform_1(%arg0: i32) -> (i32, i32) {
    %c0_i32 = arith.constant 0 : i32
    %c0_i32_0 = arith.constant 0 : i32
    %c0_i32_1 = arith.constant 0 : i32
    return %c0_i32, %c0_i32_0 : i32, i32
  }
  func.func @transform_2(%arg0: i32) -> (i32, i32) {
    %c0_i32 = arith.constant 0 : i32
    %c0_i32_0 = arith.constant 0 : i32
    %c0_i32_1 = arith.constant 0 : i32
    return %c0_i32, %c0_i32_0 : i32, i32
  }
  func.func @transform_3(%arg0: i32) -> (i32, i32) {
    %c0_i32 = arith.constant 0 : i32
    %c0_i32_0 = arith.constant 0 : i32
    %c0_i32_1 = arith.constant 0 : i32
    return %c0_i32, %c0_i32_0 : i32, i32
  }
  func.func @transform_4(%arg0: i32) -> (i32, i32) {
    %c0_i32 = arith.constant 0 : i32
    %c0_i32_0 = arith.constant 0 : i32
    %c0_i32_1 = arith.constant 0 : i32
    return %c0_i32, %c0_i32_0 : i32, i32
  }
  func.func @transform_5(%arg0: i32) -> (i32, i32) {
    %c0_i32 = arith.constant 0 : i32
    %c0_i32_0 = arith.constant 0 : i32
    %c0_i32_1 = arith.constant 0 : i32
    return %c0_i32, %c0_i32_0 : i32, i32
  }
  func.func @transform_6(%arg0: i32) -> (i32, i32) {
    %c0_i32 = arith.constant 0 : i32
    %c0_i32_0 = arith.constant 0 : i32
    %c0_i32_1 = arith.constant 0 : i32
    return %c0_i32, %c0_i32_0 : i32, i32
  }
  func.func @transform_7(%arg0: i32) -> (i32, i32) {
    %c0_i32 = arith.constant 0 : i32
    %c0_i32_0 = arith.constant 0 : i32
    %c0_i32_1 = arith.constant 0 : i32
    return %c0_i32, %c0_i32_0 : i32, i32
  }
  func.func @transform_8(%arg0: i32) -> (i32, i32) {
    %c0_i32 = arith.constant 0 : i32
    %c0_i32_0 = arith.constant 0 : i32
    %c0_i32_1 = arith.constant 0 : i32
    return %c0_i32, %c0_i32_0 : i32, i32
  }
  func.func @transform_9(%arg0: i32) -> (i32, i32) {
    %c0_i32 = arith.constant 0 : i32
    %c0_i32_0 = arith.constant 0 : i32
    %c0_i32_1 = arith.constant 0 : i32
    return %c0_i32, %c0_i32_0 : i32, i32
  }
  func.func @transform_10(%arg0: i32) -> (i32, i32) {
    %c0_i32 = arith.constant 0 : i32
    %c0_i32_0 = arith.constant 0 : i32
    %c0_i32_1 = arith.constant 0 : i32
    return %c0_i32, %c0_i32_0 : i32, i32
  }
}

</mosaic_0001>

<llo_original>
// kernel: seq2seq_forward.1
$region0: #{seq2seq_forward.1}
  #allocation0 [shape = 'u32[]', space=smem, size = 0x4, offset = 0x4, fixed_abs, tag = 'smem constant byte address 0x4 - core index']
  #allocation1 [shape = 'u32[144,128]{1,0:T(1,128)}', space=vmem, size = 0x12000, scoped, tag = 'internal scratch']
  #allocation2 [shape = 'f32[64,32]{1,0:T(8,128)}', space=vmem, size = 0x8000, scoped, tag = 'scratch operand']
  %s0 = inlined_call_operand.vmem [shape: f32[64,32], index: 0, kind: input, shape index: {}]
  %s1 = inlined_call_operand.vmem [shape: f32[64,32], index: 1, kind: input, shape index: {}]
  %s2 = inlined_call_operand.vmem [shape: f32[32,128], index: 2, kind: input, shape index: {}]
  %s3 = inlined_call_operand.vmem [shape: f32[32,128], index: 3, kind: input, shape index: {}]
  %s4 = inlined_call_operand.vmem [shape: f32[1,128], index: 4, kind: input, shape index: {}]
  %s5 = inlined_call_operand.vmem [shape: f32[32,128], index: 5, kind: input, shape index: {}]
  %s6 = inlined_call_operand.vmem [shape: f32[32,128], index: 6, kind: input, shape index: {}]
  %s7 = inlined_call_operand.vmem [shape: f32[1,128], index: 7, kind: input, shape index: {}]
  %s8 = inlined_call_operand.vmem [shape: f32[32,128], index: 8, kind: input, shape index: {}]
  %s9 = inlined_call_operand.vmem [shape: f32[1,128], index: 9, kind: input, shape index: {}]
  %s10 = inlined_call_operand.vmem [shape: f32[64,128], index: 10, kind: output, shape index: {}]
  %s11 = sld [smem:[#allocation0]]
  $region50: #{seq2seq_forward.1} parent=0
    _
  %s13 = ssub.s32 1, %s11
  %s14 = scalar_select 0, %s13, %s11
  // Predicated region
  $region2: #{seq2seq_forward.1} parent=0 // pred_check
    _
  $region3: #{seq2seq_forward.1} parent=0 // pred_check_branch
    %16 = sbr.rel (0) target = $region5
  $region4: #{seq2seq_forward.1} parent=0 // pred_region
    _
  $region5: #{seq2seq_forward.1} parent=0 // pred_fallthru
    _
  // Predicated region
  $region6: #{seq2seq_forward.1} parent=0 // pred_check
    _
  $region7: #{seq2seq_forward.1} parent=0 // pred_check_branch
    %18 = sbr.rel (0) target = $region9
  $region8: #{seq2seq_forward.1} parent=0 // pred_region
    _
  $region9: #{seq2seq_forward.1} parent=0 // pred_fallthru
    _
  // Predicated region
  $region10: #{seq2seq_forward.1} parent=0 // pred_check
    _
  $region11: #{seq2seq_forward.1} parent=0 // pred_check_branch
    %20 = sbr.rel (0) target = $region13
  $region12: #{seq2seq_forward.1} parent=0 // pred_region
    _
  $region13: #{seq2seq_forward.1} parent=0 // pred_fallthru
    _
  // Predicated region
  $region14: #{seq2seq_forward.1} parent=0 // pred_check
    _
  $region15: #{seq2seq_forward.1} parent=0 // pred_check_branch
    %22 = sbr.rel (0) target = $region17
  $region16: #{seq2seq_forward.1} parent=0 // pred_region
    _
  $region17: #{seq2seq_forward.1} parent=0 // pred_fallthru
    _
  // Predicated region
  $region18: #{seq2seq_forward.1} parent=0 // pred_check
    _
  $region19: #{seq2seq_forward.1} parent=0 // pred_check_branch
    %24 = sbr.rel (0) target = $region21
  $region20: #{seq2seq_forward.1} parent=0 // pred_region
    _
  $region21: #{seq2seq_forward.1} parent=0 // pred_fallthru
    _
  // Predicated region
  $region22: #{seq2seq_forward.1} parent=0 // pred_check
    _
  $region23: #{seq2seq_forward.1} parent=0 // pred_check_branch
    %26 = sbr.rel (0) target = $region25
  $region24: #{seq2seq_forward.1} parent=0 // pred_region
    _
  $region25: #{seq2seq_forward.1} parent=0 // pred_fallthru
    _
  // Predicated region
  $region26: #{seq2seq_forward.1} parent=0 // pred_check
    _
  $region27: #{seq2seq_forward.1} parent=0 // pred_check_branch
    %28 = sbr.rel (0) target = $region29
  $region28: #{seq2seq_forward.1} parent=0 // pred_region
    _
  $region29: #{seq2seq_forward.1} parent=0 // pred_fallthru
    _
  // Predicated region
  $region30: #{seq2seq_forward.1} parent=0 // pred_check
    _
  $region31: #{seq2seq_forward.1} parent=0 // pred_check_branch
    %30 = sbr.rel (0) target = $region33
  $region32: #{seq2seq_forward.1} parent=0 // pred_region
    _
  $region33: #{seq2seq_forward.1} parent=0 // pred_fallthru
    _
  // Predicated region
  $region34: #{seq2seq_forward.1} parent=0 // pred_check
    _
  $region35: #{seq2seq_forward.1} parent=0 // pred_check_branch
    %32 = sbr.rel (0) target = $region37
  $region36: #{seq2seq_forward.1} parent=0 // pred_region
    _
  $region37: #{seq2seq_forward.1} parent=0 // pred_fallthru
    _
  // Predicated region
  $region38: #{seq2seq_forward.1} parent=0 // pred_check
    _
  $region39: #{seq2seq_forward.1} parent=0 // pred_check_branch
    %34 = sbr.rel (0) target = $region41
  $region40: #{seq2seq_forward.1} parent=0 // pred_region
    _
  $region41: #{seq2seq_forward.1} parent=0 // pred_fallthru
    _
  %v35 = vld [vmem:[%s0] sm:$0xff]
  %v36 = vld [vmem:[%s0 + $0x8] sm:$0xff]
  %v37 = vld [vmem:[%s0 + $0x10] sm:$0xff]
  %v38 = vld [vmem:[%s0 + $0x18] sm:$0xff]
  %v39 = vld [vmem:[%s0 + $0x20] sm:$0xff]
  %v40 = vld [vmem:[%s0 + $0x28] sm:$0xff]
  %v41 = vld [vmem:[%s0 + $0x30] sm:$0xff]
  %v42 = vld [vmem:[%s0 + $0x38] sm:$0xff]
  %v43 = vld [vmem:[%s2] sm:$0xff]
  %v44 = vld [vmem:[%s2 + $0x8] sm:$0xff]
  %v45 = vld [vmem:[%s2 + $0x10] sm:$0xff]
  %v46 = vld [vmem:[%s2 + $0x18] sm:$0xff]
  %v47 = vld [vmem:[%s4] sm:$0x1]
  %v49 = vlaneseq
  %v50 = vshrl.u32 %v49, 7
  %v51 = vsub.s32 0, %v50
  %v52 = vrot.slane %v47, %v51
  %vm54 = vcmask 261120
  %v56 = vsel %vm54, %v35, 0
  %v59 = vsel %vm54, %v36, 0
  %v62 = vsel %vm54, %v37, 0
  %v65 = vsel %vm54, %v38, 0
  %v68 = vsel %vm54, %v39, 0
  %v71 = vsel %vm54, %v40, 0
  %v74 = vsel %vm54, %v41, 0
  %v77 = vsel %vm54, %v42, 0
  %79 = vmatprep.subr.mxu0 0.0
  %80 = vmatpush1.msra.mxu0 0.0
  %81 = vmatprep.subr.mxu0 0.0
  %82 = vmatpush1.msra.mxu0 0.0
  %83 = vmatprep.subr.mxu0 0.0
  %84 = vmatpush1.msra.mxu0 0.0
  %85 = vmatprep.subr.mxu0 0.0
  %86 = vmatpush1.msra.mxu0 0.0
  %87 = vmatprep.subr.mxu0 0.0
  %88 = vmatpush1.msra.mxu0 0.0
  %89 = vmatprep.subr.mxu0 0.0
  %90 = vmatpush1.msra.mxu0 0.0
  %91 = vmatprep.subr.mxu0 0.0
  %92 = vmatpush1.msra.mxu0 0.0
  %93 = vmatprep.subr.mxu0 0.0
  %94 = vmatpush1.msra.mxu0 0.0
  %95 = vmatprep.subr.mxu0 0.0
  %96 = vmatpush1.msra.mxu0 0.0
  %97 = vmatprep.subr.mxu0 0.0
  %98 = vmatpush1.msra.mxu0 0.0
  %99 = vmatprep.subr.mxu0 0.0
  %100 = vmatpush1.msra.mxu0 0.0
  %101 = vmatprep.subr.mxu0 0.0
  %102 = vmatpush1.msra.mxu0 0.0
  %103 = vmatprep.subr.mxu0 0.0
  %104 = vmatpush1.msra.mxu0 %v46
  %105 = vmatprep.subr.mxu0 0.0
  %106 = vmatpush1.msra.mxu0 %v45
  %107 = vmatprep.subr.mxu0 0.0
  %108 = vmatpush1.msra.mxu0 %v44
  %109 = vmatprep.subr.mxu0 0.0
  %110 = vmatpush1.msra.mxu0 %v43
  %111 = vmatprep.subr.mxu0 0.0
  %112 = vmatpush2.msra.mxu0 0.0
  %113 = vmatprep.subr.mxu0 0.0
  %114 = vmatpush2.msra.mxu0 0.0
  %115 = vmatprep.subr.mxu0 0.0
  %116 = vmatpush2.msra.mxu0 0.0
  %117 = vmatprep.subr.mxu0 0.0
  %118 = vmatpush2.msra.mxu0 0.0
  %119 = vmatprep.subr.mxu0 0.0
  %120 = vmatpush2.msra.mxu0 0.0
  %121 = vmatprep.subr.mxu0 0.0
  %122 = vmatpush2.msra.mxu0 0.0
  %123 = vmatprep.subr.mxu0 0.0
  %124 = vmatpush2.msra.mxu0 0.0
  %125 = vmatprep.subr.mxu0 0.0
  %126 = vmatpush2.msra.mxu0 0.0
  %127 = vmatprep.subr.mxu0 0.0
  %128 = vmatpush2.msra.mxu0 0.0
  %129 = vmatprep.subr.mxu0 0.0
  %130 = vmatpush2.msra.mxu0 0.0
  %131 = vmatprep.subr.mxu0 0.0
  %132 = vmatpush2.msra.mxu0 0.0
  %133 = vmatprep.subr.mxu0 0.0
  %134 = vmatpush2.msra.mxu0 0.0
  %135 = vmatprep.subr.mxu0 0.0
  %136 = vmatpush2.msra.mxu0 0.0
  %137 = vmatprep.subr.mxu0 0.0
  %138 = vmatpush2.msra.mxu0 0.0
  %139 = vmatprep.subr.mxu0 0.0
  %140 = vmatpush2.msra.mxu0 0.0
  %141 = vmatprep.subr.mxu0 0.0
  %142 = vmatpush2.msra.mxu0 0.0
  %143 = vmatprep.mubr.f32.mxu0 0.0
  %144 = vmatmul.mubr.f32.gmra.mxu0 %v56
  %v145 = vpop.f32.mrf.mxu0
  %v146 = vadd.f32 %v52, %v145
  %v147 = vpop.f32.mrf.mxu0
  %148 = vmatprep.mubr.f32.mxu0 0.0
  %149 = vmatmul.mubr.f32.gmra.mxu0 %v59
  %v150 = vpop.f32.mrf.mxu0
  %v151 = vadd.f32 %v52, %v150
  %v152 = vpop.f32.mrf.mxu0
  %153 = vmatprep.mubr.f32.mxu0 0.0
  %154 = vmatmul.mubr.f32.gmra.mxu0 %v62
  %v155 = vpop.f32.mrf.mxu0
  %v156 = vadd.f32 %v52, %v155
  %v157 = vpop.f32.mrf.mxu0
  %158 = vmatprep.mubr.f32.mxu0 0.0
  %159 = vmatmul.mubr.f32.gmra.mxu0 %v65
  %v160 = vpop.f32.mrf.mxu0
  %v161 = vadd.f32 %v52, %v160
  %v162 = vpop.f32.mrf.mxu0
  %163 = vmatprep.mubr.f32.mxu0 0.0
  %164 = vmatmul.mubr.f32.gmra.mxu0 %v68
  %v165 = vpop.f32.mrf.mxu0
  %v166 = vadd.f32 %v52, %v165
  %v167 = vpop.f32.mrf.mxu0
  %168 = vmatprep.mubr.f32.mxu0 0.0
  %169 = vmatmul.mubr.f32.gmra.mxu0 %v71
  %v170 = vpop.f32.mrf.mxu0
  %v171 = vadd.f32 %v52, %v170
  %v172 = vpop.f32.mrf.mxu0
  %173 = vmatprep.mubr.f32.mxu0 0.0
  %174 = vmatmul.mubr.f32.gmra.mxu0 %v74
  %v175 = vpop.f32.mrf.mxu0
  %v176 = vadd.f32 %v52, %v175
  %v177 = vpop.f32.mrf.mxu0
  %178 = vmatprep.mubr.f32.mxu0 0.0
  %179 = vmatmul.mubr.f32.gmra.mxu0 %v77
  %v180 = vpop.f32.mrf.mxu0
  %v181 = vadd.f32 %v52, %v180
  %v182 = vpop.f32.mrf.mxu0
  %183 = vdwg.mxu0
  %v184 = vld [vmem:[%s1] sm:$0xff]
  %v185 = vld [vmem:[%s1 + $0x8] sm:$0xff]
  %v186 = vld [vmem:[%s1 + $0x10] sm:$0xff]
  %v187 = vld [vmem:[%s1 + $0x18] sm:$0xff]
  %v188 = vld [vmem:[%s1 + $0x20] sm:$0xff]
  %v189 = vld [vmem:[%s1 + $0x28] sm:$0xff]
  %v190 = vld [vmem:[%s1 + $0x30] sm:$0xff]
  %v191 = vld [vmem:[%s1 + $0x38] sm:$0xff]
  %v192 = vld [vmem:[%s5] sm:$0xff]
  %v193 = vld [vmem:[%s5 + $0x8] sm:$0xff]
  %v194 = vld [vmem:[%s5 + $0x10] sm:$0xff]
  %v195 = vld [vmem:[%s5 + $0x18] sm:$0xff]
  %v196 = vld [vmem:[%s7] sm:$0x1]
  %v198 = vlaneseq
  %v199 = vshrl.u32 %v198, 7
  %v200 = vsub.s32 0, %v199
  %v201 = vrot.slane %v196, %v200
  %v204 = vsel %vm54, %v184, 0
  %v207 = vsel %vm54, %v185, 0
  %v210 = vsel %vm54, %v186, 0
  %v213 = vsel %vm54, %v187, 0
  %v216 = vsel %vm54, %v188, 0
  %v219 = vsel %vm54, %v189, 0
  %v222 = vsel %vm54, %v190, 0
  %v225 = vsel %vm54, %v191, 0
  %227 = vmatprep.subr.mxu0 0.0
  %228 = vmatpush1.msra.mxu0 0.0
  %229 = vmatprep.subr.mxu0 0.0
  %230 = vmatpush1.msra.mxu0 0.0
  %231 = vmatprep.subr.mxu0 0.0
  %232 = vmatpush1.msra.mxu0 0.0
  %233 = vmatprep.subr.mxu0 0.0
  %234 = vmatpush1.msra.mxu0 0.0
  %235 = vmatprep.subr.mxu0 0.0
  %236 = vmatpush1.msra.mxu0 0.0
  %237 = vmatprep.subr.mxu0 0.0
  %238 = vmatpush1.msra.mxu0 0.0
  %239 = vmatprep.subr.mxu0 0.0
  %240 = vmatpush1.msra.mxu0 0.0
  %241 = vmatprep.subr.mxu0 0.0
  %242 = vmatpush1.msra.mxu0 0.0
  %243 = vmatprep.subr.mxu0 0.0
  %244 = vmatpush1.msra.mxu0 0.0
  %245 = vmatprep.subr.mxu0 0.0
  %246 = vmatpush1.msra.mxu0 0.0
  %247 = vmatprep.subr.mxu0 0.0
  %248 = vmatpush1.msra.mxu0 0.0
  %249 = vmatprep.subr.mxu0 0.0
  %250 = vmatpush1.msra.mxu0 0.0
  %251 = vmatprep.subr.mxu0 0.0
  %252 = vmatpush1.msra.mxu0 %v195
  %253 = vmatprep.subr.mxu0 0.0
  %254 = vmatpush1.msra.mxu0 %v194
  %255 = vmatprep.subr.mxu0 0.0
  %256 = vmatpush1.msra.mxu0 %v193
  %257 = vmatprep.subr.mxu0 0.0
  %258 = vmatpush1.msra.mxu0 %v192
  %259 = vmatprep.subr.mxu0 0.0
  %260 = vmatpush2.msra.mxu0 0.0
  %261 = vmatprep.subr.mxu0 0.0
  %262 = vmatpush2.msra.mxu0 0.0
  %263 = vmatprep.subr.mxu0 0.0
  %264 = vmatpush2.msra.mxu0 0.0
  %265 = vmatprep.subr.mxu0 0.0
  %266 = vmatpush2.msra.mxu0 0.0
  %267 = vmatprep.subr.mxu0 0.0
  %268 = vmatpush2.msra.mxu0 0.0
  %269 = vmatprep.subr.mxu0 0.0
  %270 = vmatpush2.msra.mxu0 0.0
  %271 = vmatprep.subr.mxu0 0.0
  %272 = vmatpush2.msra.mxu0 0.0
  %273 = vmatprep.subr.mxu0 0.0
  %274 = vmatpush2.msra.mxu0 0.0
  %275 = vmatprep.subr.mxu0 0.0
  %276 = vmatpush2.msra.mxu0 0.0
  %277 = vmatprep.subr.mxu0 0.0
  %278 = vmatpush2.msra.mxu0 0.0
  %279 = vmatprep.subr.mxu0 0.0
  %280 = vmatpush2.msra.mxu0 0.0
  %281 = vmatprep.subr.mxu0 0.0
  %282 = vmatpush2.msra.mxu0 0.0
  %283 = vmatprep.subr.mxu0 0.0
  %284 = vmatpush2.msra.mxu0 0.0
  %285 = vmatprep.subr.mxu0 0.0
  %286 = vmatpush2.msra.mxu0 0.0
  %287 = vmatprep.subr.mxu0 0.0
  %288 = vmatpush2.msra.mxu0 0.0
  %289 = vmatprep.subr.mxu0 0.0
  %290 = vmatpush2.msra.mxu0 0.0
  %291 = vmatprep.mubr.f32.mxu0 0.0
  %292 = vmatmul.mubr.f32.gmra.mxu0 %v204
  %v293 = vpop.f32.mrf.mxu0
  %v294 = vadd.f32 %v201, %v293
  %v295 = vpop.f32.mrf.mxu0
  %296 = vmatprep.mubr.f32.mxu0 0.0
  %297 = vmatmul.mubr.f32.gmra.mxu0 %v207
  %v298 = vpop.f32.mrf.mxu0
  %v299 = vadd.f32 %v201, %v298
  %v300 = vpop.f32.mrf.mxu0
  %301 = vmatprep.mubr.f32.mxu0 0.0
  %302 = vmatmul.mubr.f32.gmra.mxu0 %v210
  %v303 = vpop.f32.mrf.mxu0
  %v304 = vadd.f32 %v201, %v303
  %v305 = vpop.f32.mrf.mxu0
  %306 = vmatprep.mubr.f32.mxu0 0.0
  %307 = vmatmul.mubr.f32.gmra.mxu0 %v213
  %v308 = vpop.f32.mrf.mxu0
  %v309 = vadd.f32 %v201, %v308
  %v310 = vpop.f32.mrf.mxu0
  %311 = vmatprep.mubr.f32.mxu0 0.0
  %312 = vmatmul.mubr.f32.gmra.mxu0 %v216
  %v313 = vpop.f32.mrf.mxu0
  %v314 = vadd.f32 %v201, %v313
  %v315 = vpop.f32.mrf.mxu0
  %316 = vmatprep.mubr.f32.mxu0 0.0
  %317 = vmatmul.mubr.f32.gmra.mxu0 %v219
  %v318 = vpop.f32.mrf.mxu0
  %v319 = vadd.f32 %v201, %v318
  %v320 = vpop.f32.mrf.mxu0
  %321 = vmatprep.mubr.f32.mxu0 0.0
  %322 = vmatmul.mubr.f32.gmra.mxu0 %v222
  %v323 = vpop.f32.mrf.mxu0
  %v324 = vadd.f32 %v201, %v323
  %v325 = vpop.f32.mrf.mxu0
  %326 = vmatprep.mubr.f32.mxu0 0.0
  %327 = vmatmul.mubr.f32.gmra.mxu0 %v225
  %v328 = vpop.f32.mrf.mxu0
  %v329 = vadd.f32 %v201, %v328
  %v330 = vpop.f32.mrf.mxu0
  %331 = vdwg.mxu0
  %v332 = vld [vmem:[%s3] sm:$0xff]
  %v333 = vld [vmem:[%s3 + $0x8] sm:$0xff]
  %v334 = vld [vmem:[%s3 + $0x10] sm:$0xff]
  %v335 = vld [vmem:[%s3 + $0x18] sm:$0xff]
  %v336 = vld [vmem:[%s6] sm:$0xff]
  %v337 = vld [vmem:[%s6 + $0x8] sm:$0xff]
  %v338 = vld [vmem:[%s6 + $0x10] sm:$0xff]
  %v339 = vld [vmem:[%s6 + $0x18] sm:$0xff]
  %v341 = vsel %vm54, 0.0, 0
  %343 = vmatprep.subr.mxu0 0.0
  %344 = vmatpush1.msra.mxu0 0.0
  %345 = vmatprep.subr.mxu0 0.0
  %346 = vmatpush1.msra.mxu0 0.0
  %347 = vmatprep.subr.mxu0 0.0
  %348 = vmatpush1.msra.mxu0 0.0
  %349 = vmatprep.subr.mxu0 0.0
  %350 = vmatpush1.msra.mxu0 0.0
  %351 = vmatprep.subr.mxu0 0.0
  %352 = vmatpush1.msra.mxu0 0.0
  %353 = vmatprep.subr.mxu0 0.0
  %354 = vmatpush1.msra.mxu0 0.0
  %355 = vmatprep.subr.mxu0 0.0
  %356 = vmatpush1.msra.mxu0 0.0
  %357 = vmatprep.subr.mxu0 0.0
  %358 = vmatpush1.msra.mxu0 0.0
  %359 = vmatprep.subr.mxu0 0.0
  %360 = vmatpush1.msra.mxu0 0.0
  %361 = vmatprep.subr.mxu0 0.0
  %362 = vmatpush1.msra.mxu0 0.0
  %363 = vmatprep.subr.mxu0 0.0
  %364 = vmatpush1.msra.mxu0 0.0
  %365 = vmatprep.subr.mxu0 0.0
  %366 = vmatpush1.msra.mxu0 0.0
  %367 = vmatprep.subr.mxu0 0.0
  %368 = vmatpush1.msra.mxu0 %v335
  %369 = vmatprep.subr.mxu0 0.0
  %370 = vmatpush1.msra.mxu0 %v334
  %371 = vmatprep.subr.mxu0 0.0
  %372 = vmatpush1.msra.mxu0 %v333
  %373 = vmatprep.subr.mxu0 0.0
  %374 = vmatpush1.msra.mxu0 %v332
  %375 = vmatprep.subr.mxu0 0.0
  %376 = vmatpush2.msra.mxu0 0.0
  %377 = vmatprep.subr.mxu0 0.0
  %378 = vmatpush2.msra.mxu0 0.0
  %379 = vmatprep.subr.mxu0 0.0
  %380 = vmatpush2.msra.mxu0 0.0
  %381 = vmatprep.subr.mxu0 0.0
  %382 = vmatpush2.msra.mxu0 0.0
  %383 = vmatprep.subr.mxu0 0.0
  %384 = vmatpush2.msra.mxu0 0.0
  %385 = vmatprep.subr.mxu0 0.0
  %386 = vmatpush2.msra.mxu0 0.0
  %387 = vmatprep.subr.mxu0 0.0
  %388 = vmatpush2.msra.mxu0 0.0
  %389 = vmatprep.subr.mxu0 0.0
  %390 = vmatpush2.msra.mxu0 0.0
  %391 = vmatprep.subr.mxu0 0.0
  %392 = vmatpush2.msra.mxu0 0.0
  %393 = vmatprep.subr.mxu0 0.0
  %394 = vmatpush2.msra.mxu0 0.0
  %395 = vmatprep.subr.mxu0 0.0
  %396 = vmatpush2.msra.mxu0 0.0
  %397 = vmatprep.subr.mxu0 0.0
  %398 = vmatpush2.msra.mxu0 0.0
  %399 = vmatprep.subr.mxu0 0.0
  %400 = vmatpush2.msra.mxu0 0.0
  %401 = vmatprep.subr.mxu0 0.0
  %402 = vmatpush2.msra.mxu0 0.0
  %403 = vmatprep.subr.mxu0 0.0
  %404 = vmatpush2.msra.mxu0 0.0
  %405 = vmatprep.subr.mxu0 0.0
  %406 = vmatpush2.msra.mxu0 0.0
  %407 = vmatprep.mubr.f32.mxu0 0.0
  %408 = vmatmul.mubr.f32.gmra.mxu0 %v341
  %v409 = vpop.f32.mrf.mxu0
  %v410 = vadd.f32 0.0, %v409
  %v411 = vpop.f32.mrf.mxu0
  %412 = vdwg.mxu0
  %v413 = vadd.f32 %v146, %v410
  %v414 = vxor.u32 %v413, 2147483648
  %v415 = vmul.f32 %v414, 1.442695
  %v416 = vpow.pop %v415
  %v417 = vadd.f32 %v416, 1.0
  %v418 = vrcp.pop %v417
  %v419 = vmul.f32 1.0, %v418
  %v420 = vtanh.pop %v413
  %v421 = vmul.f32 %v419, 0.0
  %423 = vrot.lane.b32.xlu0 %v420, 64
  %v424 = vpop.permute.xlu0 %423
  %v426 = vmul.f32 %v419, %v424
  %428 = vrot.lane.b32.xlu0 %v426, 32
  %v429 = vpop.permute.xlu0 %428
  %v431 = vadd.f32 %v421, %v429
  %v432 = vtanh.pop %v431
  %434 = vrot.lane.b32.xlu0 %v432, 64
  %v435 = vpop.permute.xlu0 %434
  %v437 = vmul.f32 %v419, %v435
  %439 = vrot.lane.b32.xlu0 %v437, 32
  %v440 = vpop.permute.xlu0 %439
  %v441 = vsel %vm54, %v440, 0
  %443 = vmatprep.subr.mxu0 0.0
  %444 = vmatpush1.msra.mxu0 0.0
  %445 = vmatprep.subr.mxu0 0.0
  %446 = vmatpush1.msra.mxu0 0.0
  %447 = vmatprep.subr.mxu0 0.0
  %448 = vmatpush1.msra.mxu0 0.0
  %449 = vmatprep.subr.mxu0 0.0
  %450 = vmatpush1.msra.mxu0 0.0
  %451 = vmatprep.subr.mxu0 0.0
  %452 = vmatpush1.msra.mxu0 0.0
  %453 = vmatprep.subr.mxu0 0.0
  %454 = vmatpush1.msra.mxu0 0.0
  %455 = vmatprep.subr.mxu0 0.0
  %456 = vmatpush1.msra.mxu0 0.0
  %457 = vmatprep.subr.mxu0 0.0
  %458 = vmatpush1.msra.mxu0 0.0
  %459 = vmatprep.subr.mxu0 0.0
  %460 = vmatpush1.msra.mxu0 0.0
  %461 = vmatprep.subr.mxu0 0.0
  %462 = vmatpush1.msra.mxu0 0.0
  %463 = vmatprep.subr.mxu0 0.0
  %464 = vmatpush1.msra.mxu0 0.0
  %465 = vmatprep.subr.mxu0 0.0
  %466 = vmatpush1.msra.mxu0 0.0
  %467 = vmatprep.subr.mxu0 0.0
  %468 = vmatpush1.msra.mxu0 %v335
  %469 = vmatprep.subr.mxu0 0.0
  %470 = vmatpush1.msra.mxu0 %v334
  %471 = vmatprep.subr.mxu0 0.0
  %472 = vmatpush1.msra.mxu0 %v333
  %473 = vmatprep.subr.mxu0 0.0
  %474 = vmatpush1.msra.mxu0 %v332
  %475 = vmatprep.subr.mxu0 0.0
  %476 = vmatpush2.msra.mxu0 0.0
  %477 = vmatprep.subr.mxu0 0.0
  %478 = vmatpush2.msra.mxu0 0.0
  %479 = vmatprep.subr.mxu0 0.0
  %480 = vmatpush2.msra.mxu0 0.0
  %481 = vmatprep.subr.mxu0 0.0
  %482 = vmatpush2.msra.mxu0 0.0
  %483 = vmatprep.subr.mxu0 0.0
  %484 = vmatpush2.msra.mxu0 0.0
  %485 = vmatprep.subr.mxu0 0.0
  %486 = vmatpush2.msra.mxu0 0.0
  %487 = vmatprep.subr.mxu0 0.0
  %488 = vmatpush2.msra.mxu0 0.0
  %489 = vmatprep.subr.mxu0 0.0
  %490 = vmatpush2.msra.mxu0 0.0
  %491 = vmatprep.subr.mxu0 0.0
  %492 = vmatpush2.msra.mxu0 0.0
  %493 = vmatprep.subr.mxu0 0.0
  %494 = vmatpush2.msra.mxu0 0.0
  %495 = vmatprep.subr.mxu0 0.0
  %496 = vmatpush2.msra.mxu0 0.0
  %497 = vmatprep.subr.mxu0 0.0
  %498 = vmatpush2.msra.mxu0 0.0
  %499 = vmatprep.subr.mxu0 0.0
  %500 = vmatpush2.msra.mxu0 0.0
  %501 = vmatprep.subr.mxu0 0.0
  %502 = vmatpush2.msra.mxu0 0.0
  %503 = vmatprep.subr.mxu0 0.0
  %504 = vmatpush2.msra.mxu0 0.0
  %505 = vmatprep.subr.mxu0 0.0
  %506 = vmatpush2.msra.mxu0 0.0
  %507 = vmatprep.mubr.f32.mxu0 0.0
  %508 = vmatmul.mubr.f32.gmra.mxu0 %v441
  %v509 = vpop.f32.mrf.mxu0
  %v510 = vadd.f32 0.0, %v509
  %v511 = vpop.f32.mrf.mxu0
  %512 = vdwg.mxu0
  %v513 = vadd.f32 %v151, %v510
  %v514 = vxor.u32 %v513, 2147483648
  %v515 = vmul.f32 %v514, 1.442695
  %v516 = vpow.pop %v515
  %v517 = vadd.f32 %v516, 1.0
  %v518 = vrcp.pop %v517
  %v519 = vmul.f32 1.0, %v518
  %v520 = vtanh.pop %v513
  %v521 = vmul.f32 %v519, %v431
  %523 = vrot.lane.b32.xlu0 %v520, 64
  %v524 = vpop.permute.xlu0 %523
  %v526 = vmul.f32 %v519, %v524
  %528 = vrot.lane.b32.xlu0 %v526, 32
  %v529 = vpop.permute.xlu0 %528
  %v531 = vadd.f32 %v521, %v529
  %v532 = vtanh.pop %v531
  %534 = vrot.lane.b32.xlu0 %v532, 64
  %v535 = vpop.permute.xlu0 %534
  %v537 = vmul.f32 %v519, %v535
  %539 = vrot.lane.b32.xlu0 %v537, 32
  %v540 = vpop.permute.xlu0 %539
  %v541 = vsel %vm54, %v540, 0
  %543 = vmatprep.subr.mxu0 0.0
  %544 = vmatpush1.msra.mxu0 0.0
  %545 = vmatprep.subr.mxu0 0.0
  %546 = vmatpush1.msra.mxu0 0.0
  %547 = vmatprep.subr.mxu0 0.0
  %548 = vmatpush1.msra.mxu0 0.0
  %549 = vmatprep.subr.mxu0 0.0
  %550 = vmatpush1.msra.mxu0 0.0
  %551 = vmatprep.subr.mxu0 0.0
  %552 = vmatpush1.msra.mxu0 0.0
  %553 = vmatprep.subr.mxu0 0.0
  %554 = vmatpush1.msra.mxu0 0.0
  %555 = vmatprep.subr.mxu0 0.0
  %556 = vmatpush1.msra.mxu0 0.0
  %557 = vmatprep.subr.mxu0 0.0
  %558 = vmatpush1.msra.mxu0 0.0
  %559 = vmatprep.subr.mxu0 0.0
  %560 = vmatpush1.msra.mxu0 0.0
  %561 = vmatprep.subr.mxu0 0.0
  %562 = vmatpush1.msra.mxu0 0.0
  %563 = vmatprep.subr.mxu0 0.0
  %564 = vmatpush1.msra.mxu0 0.0
  %565 = vmatprep.subr.mxu0 0.0
  %566 = vmatpush1.msra.mxu0 0.0
  %567 = vmatprep.subr.mxu0 0.0
  %568 = vmatpush1.msra.mxu0 %v335
  %569 = vmatprep.subr.mxu0 0.0
  %570 = vmatpush1.msra.mxu0 %v334
  %571 = vmatprep.subr.mxu0 0.0
  %572 = vmatpush1.msra.mxu0 %v333
  %573 = vmatprep.subr.mxu0 0.0
  %574 = vmatpush1.msra.mxu0 %v332
  %575 = vmatprep.subr.mxu0 0.0
  %576 = vmatpush2.msra.mxu0 0.0
  %577 = vmatprep.subr.mxu0 0.0
  %578 = vmatpush2.msra.mxu0 0.0
  %579 = vmatprep.subr.mxu0 0.0
  %580 = vmatpush2.msra.mxu0 0.0
  %581 = vmatprep.subr.mxu0 0.0
  %582 = vmatpush2.msra.mxu0 0.0
  %583 = vmatprep.subr.mxu0 0.0
  %584 = vmatpush2.msra.mxu0 0.0
  %585 = vmatprep.subr.mxu0 0.0
  %586 = vmatpush2.msra.mxu0 0.0
  %587 = vmatprep.subr.mxu0 0.0
  %588 = vmatpush2.msra.mxu0 0.0
  %589 = vmatprep.subr.mxu0 0.0
  %590 = vmatpush2.msra.mxu0 0.0
  %591 = vmatprep.subr.mxu0 0.0
  %592 = vmatpush2.msra.mxu0 0.0
  %593 = vmatprep.subr.mxu0 0.0
  %594 = vmatpush2.msra.mxu0 0.0
  %595 = vmatprep.subr.mxu0 0.0
  %596 = vmatpush2.msra.mxu0 0.0
  %597 = vmatprep.subr.mxu0 0.0
  %598 = vmatpush2.msra.mxu0 0.0
  %599 = vmatprep.subr.mxu0 0.0
  %600 = vmatpush2.msra.mxu0 0.0
  %601 = vmatprep.subr.mxu0 0.0
  %602 = vmatpush2.msra.mxu0 0.0
  %603 = vmatprep.subr.mxu0 0.0
  %604 = vmatpush2.msra.mxu0 0.0
  %605 = vmatprep.subr.mxu0 0.0
  %606 = vmatpush2.msra.mxu0 0.0
  %607 = vmatprep.mubr.f32.mxu0 0.0
  %608 = vmatmul.mubr.f32.gmra.mxu0 %v541
  %v609 = vpop.f32.mrf.mxu0
  %v610 = vadd.f32 0.0, %v609
  %v611 = vpop.f32.mrf.mxu0
  %612 = vdwg.mxu0
  %v613 = vadd.f32 %v156, %v610
  %v614 = vxor.u32 %v613, 2147483648
  %v615 = vmul.f32 %v614, 1.442695
  %v616 = vpow.pop %v615
  %v617 = vadd.f32 %v616, 1.0
  %v618 = vrcp.pop %v617
  %v619 = vmul.f32 1.0, %v618
  %v620 = vtanh.pop %v613
  %v621 = vmul.f32 %v619, %v531
  %623 = vrot.lane.b32.xlu0 %v620, 64
  %v624 = vpop.permute.xlu0 %623
  %v626 = vmul.f32 %v619, %v624
  %628 = vrot.lane.b32.xlu0 %v626, 32
  %v629 = vpop.permute.xlu0 %628
  %v631 = vadd.f32 %v621, %v629
  %v632 = vtanh.pop %v631
  %634 = vrot.lane.b32.xlu0 %v632, 64
  %v635 = vpop.permute.xlu0 %634
  %v637 = vmul.f32 %v619, %v635
  %639 = vrot.lane.b32.xlu0 %v637, 32
  %v640 = vpop.permute.xlu0 %639
  %v641 = vsel %vm54, %v640, 0
  %643 = vmatprep.subr.mxu0 0.0
  %644 = vmatpush1.msra.mxu0 0.0
  %645 = vmatprep.subr.mxu0 0.0
  %646 = vmatpush1.msra.mxu0 0.0
  %647 = vmatprep.subr.mxu0 0.0
  %648 = vmatpush1.msra.mxu0 0.0
  %649 = vmatprep.subr.mxu0 0.0
  %650 = vmatpush1.msra.mxu0 0.0
  %651 = vmatprep.subr.mxu0 0.0
  %652 = vmatpush1.msra.mxu0 0.0
  %653 = vmatprep.subr.mxu0 0.0
  %654 = vmatpush1.msra.mxu0 0.0
  %655 = vmatprep.subr.mxu0 0.0
  %656 = vmatpush1.msra.mxu0 0.0
  %657 = vmatprep.subr.mxu0 0.0
  %658 = vmatpush1.msra.mxu0 0.0
  %659 = vmatprep.subr.mxu0 0.0
  %660 = vmatpush1.msra.mxu0 0.0
  %661 = vmatprep.subr.mxu0 0.0
  %662 = vmatpush1.msra.mxu0 0.0
  %663 = vmatprep.subr.mxu0 0.0
  %664 = vmatpush1.msra.mxu0 0.0
  %665 = vmatprep.subr.mxu0 0.0
  %666 = vmatpush1.msra.mxu0 0.0
  %667 = vmatprep.subr.mxu0 0.0
  %668 = vmatpush1.msra.mxu0 %v335
  %669 = vmatprep.subr.mxu0 0.0
  %670 = vmatpush1.msra.mxu0 %v334
  %671 = vmatprep.subr.mxu0 0.0
  %672 = vmatpush1.msra.mxu0 %v333
  %673 = vmatprep.subr.mxu0 0.0
  %674 = vmatpush1.msra.mxu0 %v332
  %675 = vmatprep.subr.mxu0 0.0
  %676 = vmatpush2.msra.mxu0 0.0
  %677 = vmatprep.subr.mxu0 0.0
  %678 = vmatpush2.msra.mxu0 0.0
  %679 = vmatprep.subr.mxu0 0.0
  %680 = vmatpush2.msra.mxu0 0.0
  %681 = vmatprep.subr.mxu0 0.0
  %682 = vmatpush2.msra.mxu0 0.0
  %683 = vmatprep.subr.mxu0 0.0
  %684 = vmatpush2.msra.mxu0 0.0
  %685 = vmatprep.subr.mxu0 0.0
  %686 = vmatpush2.msra.mxu0 0.0
  %687 = vmatprep.subr.mxu0 0.0
  %688 = vmatpush2.msra.mxu0 0.0
  %689 = vmatprep.subr.mxu0 0.0
  %690 = vmatpush2.msra.mxu0 0.0
  %691 = vmatprep.subr.mxu0 0.0
  %692 = vmatpush2.msra.mxu0 0.0
  %693 = vmatprep.subr.mxu0 0.0
  %694 = vmatpush2.msra.mxu0 0.0
  %695 = vmatprep.subr.mxu0 0.0
  %696 = vmatpush2.msra.mxu0 0.0
  %697 = vmatprep.subr.mxu0 0.0
  %698 = vmatpush2.msra.mxu0 0.0
  %699 = vmatprep.subr.mxu0 0.0
  %700 = vmatpush2.msra.mxu0 0.0
  %701 = vmatprep.subr.mxu0 0.0
  %702 = vmatpush2.msra.mxu0 0.0
  %703 = vmatprep.subr.mxu0 0.0
  %704 = vmatpush2.msra.mxu0 0.0
  %705 = vmatprep.subr.mxu0 0.0
  %706 = vmatpush2.msra.mxu0 0.0
  %707 = vmatprep.mubr.f32.mxu0 0.0
  %708 = vmatmul.mubr.f32.gmra.mxu0 %v641
  %v709 = vpop.f32.mrf.mxu0
  %v710 = vadd.f32 0.0, %v709
  %v711 = vpop.f32.mrf.mxu0
  %712 = vdwg.mxu0
  %v713 = vadd.f32 %v161, %v710
  %v714 = vxor.u32 %v713, 2147483648
  %v715 = vmul.f32 %v714, 1.442695
  %v716 = vpow.pop %v715
  %v717 = vadd.f32 %v716, 1.0
  %v718 = vrcp.pop %v717
  %v719 = vmul.f32 1.0, %v718
  %v720 = vtanh.pop %v713
  %v721 = vmul.f32 %v719, %v631
  %723 = vrot.lane.b32.xlu0 %v720, 64
  %v724 = vpop.permute.xlu0 %723
  %v726 = vmul.f32 %v719, %v724
  %728 = vrot.lane.b32.xlu0 %v726, 32
  %v729 = vpop.permute.xlu0 %728
  %v731 = vadd.f32 %v721, %v729
  %v732 = vtanh.pop %v731
  %734 = vrot.lane.b32.xlu0 %v732, 64
  %v735 = vpop.permute.xlu0 %734
  %v737 = vmul.f32 %v719, %v735
  %739 = vrot.lane.b32.xlu0 %v737, 32
  %v740 = vpop.permute.xlu0 %739
  %v741 = vsel %vm54, %v740, 0
  %743 = vmatprep.subr.mxu0 0.0
  %744 = vmatpush1.msra.mxu0 0.0
  %745 = vmatprep.subr.mxu0 0.0
  %746 = vmatpush1.msra.mxu0 0.0
  %747 = vmatprep.subr.mxu0 0.0
  %748 = vmatpush1.msra.mxu0 0.0
  %749 = vmatprep.subr.mxu0 0.0
  %750 = vmatpush1.msra.mxu0 0.0
  %751 = vmatprep.subr.mxu0 0.0
  %752 = vmatpush1.msra.mxu0 0.0
  %753 = vmatprep.subr.mxu0 0.0
  %754 = vmatpush1.msra.mxu0 0.0
  %755 = vmatprep.subr.mxu0 0.0
  %756 = vmatpush1.msra.mxu0 0.0
  %757 = vmatprep.subr.mxu0 0.0
  %758 = vmatpush1.msra.mxu0 0.0
  %759 = vmatprep.subr.mxu0 0.0
  %760 = vmatpush1.msra.mxu0 0.0
  %761 = vmatprep.subr.mxu0 0.0
  %762 = vmatpush1.msra.mxu0 0.0
  %763 = vmatprep.subr.mxu0 0.0
  %764 = vmatpush1.msra.mxu0 0.0
  %765 = vmatprep.subr.mxu0 0.0
  %766 = vmatpush1.msra.mxu0 0.0
  %767 = vmatprep.subr.mxu0 0.0
  %768 = vmatpush1.msra.mxu0 %v335
  %769 = vmatprep.subr.mxu0 0.0
  %770 = vmatpush1.msra.mxu0 %v334
  %771 = vmatprep.subr.mxu0 0.0
  %772 = vmatpush1.msra.mxu0 %v333
  %773 = vmatprep.subr.mxu0 0.0
  %774 = vmatpush1.msra.mxu0 %v332
  %775 = vmatprep.subr.mxu0 0.0
  %776 = vmatpush2.msra.mxu0 0.0
  %777 = vmatprep.subr.mxu0 0.0
  %778 = vmatpush2.msra.mxu0 0.0
  %779 = vmatprep.subr.mxu0 0.0
  %780 = vmatpush2.msra.mxu0 0.0
  %781 = vmatprep.subr.mxu0 0.0
  %782 = vmatpush2.msra.mxu0 0.0
  %783 = vmatprep.subr.mxu0 0.0
  %784 = vmatpush2.msra.mxu0 0.0
  %785 = vmatprep.subr.mxu0 0.0
  %786 = vmatpush2.msra.mxu0 0.0
  %787 = vmatprep.subr.mxu0 0.0
  %788 = vmatpush2.msra.mxu0 0.0
  %789 = vmatprep.subr.mxu0 0.0
  %790 = vmatpush2.msra.mxu0 0.0
  %791 = vmatprep.subr.mxu0 0.0
  %792 = vmatpush2.msra.mxu0 0.0
  %793 = vmatprep.subr.mxu0 0.0
  %794 = vmatpush2.msra.mxu0 0.0
  %795 = vmatprep.subr.mxu0 0.0
  %796 = vmatpush2.msra.mxu0 0.0
  %797 = vmatprep.subr.mxu0 0.0
  %798 = vmatpush2.msra.mxu0 0.0
  %799 = vmatprep.subr.mxu0 0.0
  %800 = vmatpush2.msra.mxu0 0.0
  %801 = vmatprep.subr.mxu0 0.0
  %802 = vmatpush2.msra.mxu0 0.0
  %803 = vmatprep.subr.mxu0 0.0
  %804 = vmatpush2.msra.mxu0 0.0
  %805 = vmatprep.subr.mxu0 0.0
  %806 = vmatpush2.msra.mxu0 0.0
  %807 = vmatprep.mubr.f32.mxu0 0.0
  %808 = vmatmul.mubr.f32.gmra.mxu0 %v741
  %v809 = vpop.f32.mrf.mxu0
  %v810 = vadd.f32 0.0, %v809
  %v811 = vpop.f32.mrf.mxu0
  %812 = vdwg.mxu0
  %v813 = vadd.f32 %v166, %v810
  %v814 = vxor.u32 %v813, 2147483648
  %v815 = vmul.f32 %v814, 1.442695
  %v816 = vpow.pop %v815
  %v817 = vadd.f32 %v816, 1.0
  %v818 = vrcp.pop %v817
  %v819 = vmul.f32 1.0, %v818
  %v820 = vtanh.pop %v813
  %v821 = vmul.f32 %v819, %v731
  %823 = vrot.lane.b32.xlu0 %v820, 64
  %v824 = vpop.permute.xlu0 %823
  %v826 = vmul.f32 %v819, %v824
  %828 = vrot.lane.b32.xlu0 %v826, 32
  %v829 = vpop.permute.xlu0 %828
  %v831 = vadd.f32 %v821, %v829
  %v832 = vtanh.pop %v831
  %834 = vrot.lane.b32.xlu0 %v832, 64
  %v835 = vpop.permute.xlu0 %834
  %v837 = vmul.f32 %v819, %v835
  %839 = vrot.lane.b32.xlu0 %v837, 32
  %v840 = vpop.permute.xlu0 %839
  %v841 = vsel %vm54, %v840, 0
  %843 = vmatprep.subr.mxu0 0.0
  %844 = vmatpush1.msra.mxu0 0.0
  %845 = vmatprep.subr.mxu0 0.0
  %846 = vmatpush1.msra.mxu0 0.0
  %847 = vmatprep.subr.mxu0 0.0
  %848 = vmatpush1.msra.mxu0 0.0
  %849 = vmatprep.subr.mxu0 0.0
  %850 = vmatpush1.msra.mxu0 0.0
  %851 = vmatprep.subr.mxu0 0.0
  %852 = vmatpush1.msra.mxu0 0.0
  %853 = vmatprep.subr.mxu0 0.0
  %854 = vmatpush1.msra.mxu0 0.0
  %855 = vmatprep.subr.mxu0 0.0
  %856 = vmatpush1.msra.mxu0 0.0
  %857 = vmatprep.subr.mxu0 0.0
  %858 = vmatpush1.msra.mxu0 0.0
  %859 = vmatprep.subr.mxu0 0.0
  %860 = vmatpush1.msra.mxu0 0.0
  %861 = vmatprep.subr.mxu0 0.0
  %862 = vmatpush1.msra.mxu0 0.0
  %863 = vmatprep.subr.mxu0 0.0
  %864 = vmatpush1.msra.mxu0 0.0
  %865 = vmatprep.subr.mxu0 0.0
  %866 = vmatpush1.msra.mxu0 0.0
  %867 = vmatprep.subr.mxu0 0.0
  %868 = vmatpush1.msra.mxu0 %v335
  %869 = vmatprep.subr.mxu0 0.0
  %870 = vmatpush1.msra.mxu0 %v334
  %871 = vmatprep.subr.mxu0 0.0
  %872 = vmatpush1.msra.mxu0 %v333
  %873 = vmatprep.subr.mxu0 0.0
  %874 = vmatpush1.msra.mxu0 %v332
  %875 = vmatprep.subr.mxu0 0.0
  %876 = vmatpush2.msra.mxu0 0.0
  %877 = vmatprep.subr.mxu0 0.0
  %878 = vmatpush2.msra.mxu0 0.0
  %879 = vmatprep.subr.mxu0 0.0
  %880 = vmatpush2.msra.mxu0 0.0
  %881 = vmatprep.subr.mxu0 0.0
  %882 = vmatpush2.msra.mxu0 0.0
  %883 = vmatprep.subr.mxu0 0.0
  %884 = vmatpush2.msra.mxu0 0.0
  %885 = vmatprep.subr.mxu0 0.0
  %886 = vmatpush2.msra.mxu0 0.0
  %887 = vmatprep.subr.mxu0 0.0
  %888 = vmatpush2.msra.mxu0 0.0
  %889 = vmatprep.subr.mxu0 0.0
  %890 = vmatpush2.msra.mxu0 0.0
  %891 = vmatprep.subr.mxu0 0.0
  %892 = vmatpush2.msra.mxu0 0.0
  %893 = vmatprep.subr.mxu0 0.0
  %894 = vmatpush2.msra.mxu0 0.0
  %895 = vmatprep.subr.mxu0 0.0
  %896 = vmatpush2.msra.mxu0 0.0
  %897 = vmatprep.subr.mxu0 0.0
  %898 = vmatpush2.msra.mxu0 0.0
  %899 = vmatprep.subr.mxu0 0.0
  %900 = vmatpush2.msra.mxu0 0.0
  %901 = vmatprep.subr.mxu0 0.0
  %902 = vmatpush2.msra.mxu0 0.0
  %903 = vmatprep.subr.mxu0 0.0
  %904 = vmatpush2.msra.mxu0 0.0
  %905 = vmatprep.subr.mxu0 0.0
  %906 = vmatpush2.msra.mxu0 0.0
  %907 = vmatprep.mubr.f32.mxu0 0.0
  %908 = vmatmul.mubr.f32.gmra.mxu0 %v841
  %v909 = vpop.f32.mrf.mxu0
  %v910 = vadd.f32 0.0, %v909
  %v911 = vpop.f32.mrf.mxu0
  %912 = vdwg.mxu0
  %v913 = vadd.f32 %v171, %v910
  %v914 = vxor.u32 %v913, 2147483648
  %v915 = vmul.f32 %v914, 1.442695
  %v916 = vpow.pop %v915
  %v917 = vadd.f32 %v916, 1.0
  %v918 = vrcp.pop %v917
  %v919 = vmul.f32 1.0, %v918
  %v920 = vtanh.pop %v913
  %v921 = vmul.f32 %v919, %v831
  %923 = vrot.lane.b32.xlu0 %v920, 64
  %v924 = vpop.permute.xlu0 %923
  %v926 = vmul.f32 %v919, %v924
  %928 = vrot.lane.b32.xlu0 %v926, 32
  %v929 = vpop.permute.xlu0 %928
  %v931 = vadd.f32 %v921, %v929
  %v932 = vtanh.pop %v931
  %934 = vrot.lane.b32.xlu0 %v932, 64
  %v935 = vpop.permute.xlu0 %934
  %v937 = vmul.f32 %v919, %v935
  %939 = vrot.lane.b32.xlu0 %v937, 32
  %v940 = vpop.permute.xlu0 %939
  %v941 = vsel %vm54, %v940, 0
  %943 = vmatprep.subr.mxu0 0.0
  %944 = vmatpush1.msra.mxu0 0.0
  %945 = vmatprep.subr.mxu0 0.0
  %946 = vmatpush1.msra.mxu0 0.0
  %947 = vmatprep.subr.mxu0 0.0
  %948 = vmatpush1.msra.mxu0 0.0
  %949 = vmatprep.subr.mxu0 0.0
  %950 = vmatpush1.msra.mxu0 0.0
  %951 = vmatprep.subr.mxu0 0.0
  %952 = vmatpush1.msra.mxu0 0.0
  %953 = vmatprep.subr.mxu0 0.0
  %954 = vmatpush1.msra.mxu0 0.0
  %955 = vmatprep.subr.mxu0 0.0
  %956 = vmatpush1.msra.mxu0 0.0
  %957 = vmatprep.subr.mxu0 0.0
  %958 = vmatpush1.msra.mxu0 0.0
  %959 = vmatprep.subr.mxu0 0.0
  %960 = vmatpush1.msra.mxu0 0.0
  %961 = vmatprep.subr.mxu0 0.0
  %962 = vmatpush1.msra.mxu0 0.0
  %963 = vmatprep.subr.mxu0 0.0
  %964 = vmatpush1.msra.mxu0 0.0
  %965 = vmatprep.subr.mxu0 0.0
  %966 = vmatpush1.msra.mxu0 0.0
  %967 = vmatprep.subr.mxu0 0.0
  %968 = vmatpush1.msra.mxu0 %v335
  %969 = vmatprep.subr.mxu0 0.0
  %970 = vmatpush1.msra.mxu0 %v334
  %971 = vmatprep.subr.mxu0 0.0
  %972 = vmatpush1.msra.mxu0 %v333
  %973 = vmatprep.subr.mxu0 0.0
  %974 = vmatpush1.msra.mxu0 %v332
  %975 = vmatprep.subr.mxu0 0.0
  %976 = vmatpush2.msra.mxu0 0.0
  %977 = vmatprep.subr.mxu0 0.0
  %978 = vmatpush2.msra.mxu0 0.0
  %979 = vmatprep.subr.mxu0 0.0
  %980 = vmatpush2.msra.mxu0 0.0
  %981 = vmatprep.subr.mxu0 0.0
  %982 = vmatpush2.msra.mxu0 0.0
  %983 = vmatprep.subr.mxu0 0.0
  %984 = vmatpush2.msra.mxu0 0.0
  %985 = vmatprep.subr.mxu0 0.0
  %986 = vmatpush2.msra.mxu0 0.0
  %987 = vmatprep.subr.mxu0 0.0
  %988 = vmatpush2.msra.mxu0 0.0
  %989 = vmatprep.subr.mxu0 0.0
  %990 = vmatpush2.msra.mxu0 0.0
  %991 = vmatprep.subr.mxu0 0.0
  %992 = vmatpush2.msra.mxu0 0.0
  %993 = vmatprep.subr.mxu0 0.0
  %994 = vmatpush2.msra.mxu0 0.0
  %995 = vmatprep.subr.mxu0 0.0
  %996 = vmatpush2.msra.mxu0 0.0
  %997 = vmatprep.subr.mxu0 0.0
  %998 = vmatpush2.msra.mxu0 0.0
  %999 = vmatprep.subr.mxu0 0.0
  %1000 = vmatpush2.msra.mxu0 0.0
  %1001 = vmatprep.subr.mxu0 0.0
  %1002 = vmatpush2.msra.mxu0 0.0
  %1003 = vmatprep.subr.mxu0 0.0
  %1004 = vmatpush2.msra.mxu0 0.0
  %1005 = vmatprep.subr.mxu0 0.0
  %1006 = vmatpush2.msra.mxu0 0.0
  %1007 = vmatprep.mubr.f32.mxu0 0.0
  %1008 = vmatmul.mubr.f32.gmra.mxu0 %v941
  %v1009 = vpop.f32.mrf.mxu0
  %v1010 = vadd.f32 0.0, %v1009
  %v1011 = vpop.f32.mrf.mxu0
  %1012 = vdwg.mxu0
  %v1013 = vadd.f32 %v176, %v1010
  %v1014 = vxor.u32 %v1013, 2147483648
  %v1015 = vmul.f32 %v1014, 1.442695
  %v1016 = vpow.pop %v1015
  %v1017 = vadd.f32 %v1016, 1.0
  %v1018 = vrcp.pop %v1017
  %v1019 = vmul.f32 1.0, %v1018
  %v1020 = vtanh.pop %v1013
  %v1021 = vmul.f32 %v1019, %v931
  %1023 = vrot.lane.b32.xlu0 %v1020, 64
  %v1024 = vpop.permute.xlu0 %1023
  %v1026 = vmul.f32 %v1019, %v1024
  %1028 = vrot.lane.b32.xlu0 %v1026, 32
  %v1029 = vpop.permute.xlu0 %1028
  %v1031 = vadd.f32 %v1021, %v1029
  %v1032 = vtanh.pop %v1031
  %1034 = vrot.lane.b32.xlu0 %v1032, 64
  %v1035 = vpop.permute.xlu0 %1034
  %v1037 = vmul.f32 %v1019, %v1035
  %1039 = vrot.lane.b32.xlu0 %v1037, 32
  %v1040 = vpop.permute.xlu0 %1039
  %v1041 = vsel %vm54, %v1040, 0
  %1043 = vmatprep.subr.mxu0 0.0
  %1044 = vmatpush1.msra.mxu0 0.0
  %1045 = vmatprep.subr.mxu0 0.0
  %1046 = vmatpush1.msra.mxu0 0.0
  %1047 = vmatprep.subr.mxu0 0.0
  %1048 = vmatpush1.msra.mxu0 0.0
  %1049 = vmatprep.subr.mxu0 0.0
  %1050 = vmatpush1.msra.mxu0 0.0
  %1051 = vmatprep.subr.mxu0 0.0
  %1052 = vmatpush1.msra.mxu0 0.0
  %1053 = vmatprep.subr.mxu0 0.0
  %1054 = vmatpush1.msra.mxu0 0.0
  %1055 = vmatprep.subr.mxu0 0.0
  %1056 = vmatpush1.msra.mxu0 0.0
  %1057 = vmatprep.subr.mxu0 0.0
  %1058 = vmatpush1.msra.mxu0 0.0
  %1059 = vmatprep.subr.mxu0 0.0
  %1060 = vmatpush1.msra.mxu0 0.0
  %1061 = vmatprep.subr.mxu0 0.0
  %1062 = vmatpush1.msra.mxu0 0.0
  %1063 = vmatprep.subr.mxu0 0.0
  %1064 = vmatpush1.msra.mxu0 0.0
  %1065 = vmatprep.subr.mxu0 0.0
  %1066 = vmatpush1.msra.mxu0 0.0
  %1067 = vmatprep.subr.mxu0 0.0
  %1068 = vmatpush1.msra.mxu0 %v335
  %1069 = vmatprep.subr.mxu0 0.0
  %1070 = vmatpush1.msra.mxu0 %v334
  %1071 = vmatprep.subr.mxu0 0.0
  %1072 = vmatpush1.msra.mxu0 %v333
  %1073 = vmatprep.subr.mxu0 0.0
  %1074 = vmatpush1.msra.mxu0 %v332
  %1075 = vmatprep.subr.mxu0 0.0
  %1076 = vmatpush2.msra.mxu0 0.0
  %1077 = vmatprep.subr.mxu0 0.0
  %1078 = vmatpush2.msra.mxu0 0.0
  %1079 = vmatprep.subr.mxu0 0.0
  %1080 = vmatpush2.msra.mxu0 0.0
  %1081 = vmatprep.subr.mxu0 0.0
  %1082 = vmatpush2.msra.mxu0 0.0
  %1083 = vmatprep.subr.mxu0 0.0
  %1084 = vmatpush2.msra.mxu0 0.0
  %1085 = vmatprep.subr.mxu0 0.0
  %1086 = vmatpush2.msra.mxu0 0.0
  %1087 = vmatprep.subr.mxu0 0.0
  %1088 = vmatpush2.msra.mxu0 0.0
  %1089 = vmatprep.subr.mxu0 0.0
  %1090 = vmatpush2.msra.mxu0 0.0
  %1091 = vmatprep.subr.mxu0 0.0
  %1092 = vmatpush2.msra.mxu0 0.0
  %1093 = vmatprep.subr.mxu0 0.0
  %1094 = vmatpush2.msra.mxu0 0.0
  %1095 = vmatprep.subr.mxu0 0.0
  %1096 = vmatpush2.msra.mxu0 0.0
  %1097 = vmatprep.subr.mxu0 0.0
  %1098 = vmatpush2.msra.mxu0 0.0
  %1099 = vmatprep.subr.mxu0 0.0
  %1100 = vmatpush2.msra.mxu0 0.0
  %1101 = vmatprep.subr.mxu0 0.0
  %1102 = vmatpush2.msra.mxu0 0.0
  %1103 = vmatprep.subr.mxu0 0.0
  %1104 = vmatpush2.msra.mxu0 0.0
  %1105 = vmatprep.subr.mxu0 0.0
  %1106 = vmatpush2.msra.mxu0 0.0
  %1107 = vmatprep.mubr.f32.mxu0 0.0
  %1108 = vmatmul.mubr.f32.gmra.mxu0 %v1041
  %v1109 = vpop.f32.mrf.mxu0
  %v1110 = vadd.f32 0.0, %v1109
  %v1111 = vpop.f32.mrf.mxu0
  %1112 = vdwg.mxu0
  %v1113 = vadd.f32 %v181, %v1110
  %v1114 = vxor.u32 %v1113, 2147483648
  %v1115 = vmul.f32 %v1114, 1.442695
  %v1116 = vpow.pop %v1115
  %v1117 = vadd.f32 %v1116, 1.0
  %v1118 = vrcp.pop %v1117
  %v1119 = vmul.f32 1.0, %v1118
  %v1120 = vtanh.pop %v1113
  %v1121 = vmul.f32 %v1119, %v1031
  %1123 = vrot.lane.b32.xlu0 %v1120, 64
  %v1124 = vpop.permute.xlu0 %1123
  %v1126 = vmul.f32 %v1119, %v1124
  %1128 = vrot.lane.b32.xlu0 %v1126, 32
  %v1129 = vpop.permute.xlu0 %1128
  %v1131 = vadd.f32 %v1121, %v1129
  %v1132 = vtanh.pop %v1131
  %1134 = vrot.lane.b32.xlu0 %v1132, 64
  %v1135 = vpop.permute.xlu0 %1134
  %v1137 = vmul.f32 %v1119, %v1135
  %1139 = vrot.lane.b32.xlu0 %v1137, 32
  %v1140 = vpop.permute.xlu0 %1139
  %v1141 = vsel %vm54, %v1140, 0
  %1143 = vmatprep.subr.mxu0 0.0
  %1144 = vmatpush1.msra.mxu0 0.0
  %1145 = vmatprep.subr.mxu0 0.0
  %1146 = vmatpush1.msra.mxu0 0.0
  %1147 = vmatprep.subr.mxu0 0.0
  %1148 = vmatpush1.msra.mxu0 0.0
  %1149 = vmatprep.subr.mxu0 0.0
  %1150 = vmatpush1.msra.mxu0 0.0
  %1151 = vmatprep.subr.mxu0 0.0
  %1152 = vmatpush1.msra.mxu0 0.0
  %1153 = vmatprep.subr.mxu0 0.0
  %1154 = vmatpush1.msra.mxu0 0.0
  %1155 = vmatprep.subr.mxu0 0.0
  %1156 = vmatpush1.msra.mxu0 0.0
  %1157 = vmatprep.subr.mxu0 0.0
  %1158 = vmatpush1.msra.mxu0 0.0
  %1159 = vmatprep.subr.mxu0 0.0
  %1160 = vmatpush1.msra.mxu0 0.0
  %1161 = vmatprep.subr.mxu0 0.0
  %1162 = vmatpush1.msra.mxu0 0.0
  %1163 = vmatprep.subr.mxu0 0.0
  %1164 = vmatpush1.msra.mxu0 0.0
  %1165 = vmatprep.subr.mxu0 0.0
  %1166 = vmatpush1.msra.mxu0 0.0
  %1167 = vmatprep.subr.mxu0 0.0
  %1168 = vmatpush1.msra.mxu0 %v339
  %1169 = vmatprep.subr.mxu0 0.0
  %1170 = vmatpush1.msra.mxu0 %v338
  %1171 = vmatprep.subr.mxu0 0.0
  %1172 = vmatpush1.msra.mxu0 %v337
  %1173 = vmatprep.subr.mxu0 0.0
  %1174 = vmatpush1.msra.mxu0 %v336
  %1175 = vmatprep.subr.mxu0 0.0
  %1176 = vmatpush2.msra.mxu0 0.0
  %1177 = vmatprep.subr.mxu0 0.0
  %1178 = vmatpush2.msra.mxu0 0.0
  %1179 = vmatprep.subr.mxu0 0.0
  %1180 = vmatpush2.msra.mxu0 0.0
  %1181 = vmatprep.subr.mxu0 0.0
  %1182 = vmatpush2.msra.mxu0 0.0
  %1183 = vmatprep.subr.mxu0 0.0
  %1184 = vmatpush2.msra.mxu0 0.0
  %1185 = vmatprep.subr.mxu0 0.0
  %1186 = vmatpush2.msra.mxu0 0.0
  %1187 = vmatprep.subr.mxu0 0.0
  %1188 = vmatpush2.msra.mxu0 0.0
  %1189 = vmatprep.subr.mxu0 0.0
  %1190 = vmatpush2.msra.mxu0 0.0
  %1191 = vmatprep.subr.mxu0 0.0
  %1192 = vmatpush2.msra.mxu0 0.0
  %1193 = vmatprep.subr.mxu0 0.0
  %1194 = vmatpush2.msra.mxu0 0.0
  %1195 = vmatprep.subr.mxu0 0.0
  %1196 = vmatpush2.msra.mxu0 0.0
  %1197 = vmatprep.subr.mxu0 0.0
  %1198 = vmatpush2.msra.mxu0 0.0
  %1199 = vmatprep.subr.mxu0 0.0
  %1200 = vmatpush2.msra.mxu0 0.0
  %1201 = vmatprep.subr.mxu0 0.0
  %1202 = vmatpush2.msra.mxu0 0.0
  %1203 = vmatprep.subr.mxu0 0.0
  %1204 = vmatpush2.msra.mxu0 0.0
  %1205 = vmatprep.subr.mxu0 0.0
  %1206 = vmatpush2.msra.mxu0 0.0
  %1207 = vmatprep.mubr.f32.mxu0 0.0
  %1208 = vmatmul.mubr.f32.gmra.mxu0 %v1141
  %v1209 = vpop.f32.mrf.mxu0
  %v1210 = vadd.f32 0.0, %v1209
  %v1211 = vpop.f32.mrf.mxu0
  %1212 = vdwg.mxu0
  %v1213 = vadd.f32 %v294, %v1210
  %v1214 = vxor.u32 %v1213, 2147483648
  %v1215 = vmul.f32 %v1214, 1.442695
  %v1216 = vpow.pop %v1215
  %v1217 = vadd.f32 %v1216, 1.0
  %v1218 = vrcp.pop %v1217
  %v1219 = vmul.f32 1.0, %v1218
  %v1220 = vtanh.pop %v1213
  %v1221 = vmul.f32 %v1219, %v1131
  %1223 = vrot.lane.b32.xlu0 %v1220, 64
  %v1224 = vpop.permute.xlu0 %1223
  %v1226 = vmul.f32 %v1219, %v1224
  %1228 = vrot.lane.b32.xlu0 %v1226, 32
  %v1229 = vpop.permute.xlu0 %1228
  %v1231 = vadd.f32 %v1221, %v1229
  %v1232 = vtanh.pop %v1231
  %1234 = vrot.lane.b32.xlu0 %v1232, 64
  %v1235 = vpop.permute.xlu0 %1234
  %v1237 = vmul.f32 %v1219, %v1235
  %1239 = vrot.lane.b32.xlu0 %v1237, 32
  %v1240 = vpop.permute.xlu0 %1239
  %1242 = vst.msk [vmem:[#allocation2] sm:$0xff] %vm54, %v1240
  %v1243 = vsel %vm54, %v1240, 0
  %1245 = vmatprep.subr.mxu0 0.0
  %1246 = vmatpush1.msra.mxu0 0.0
  %1247 = vmatprep.subr.mxu0 0.0
  %1248 = vmatpush1.msra.mxu0 0.0
  %1249 = vmatprep.subr.mxu0 0.0
  %1250 = vmatpush1.msra.mxu0 0.0
  %1251 = vmatprep.subr.mxu0 0.0
  %1252 = vmatpush1.msra.mxu0 0.0
  %1253 = vmatprep.subr.mxu0 0.0
  %1254 = vmatpush1.msra.mxu0 0.0
  %1255 = vmatprep.subr.mxu0 0.0
  %1256 = vmatpush1.msra.mxu0 0.0
  %1257 = vmatprep.subr.mxu0 0.0
  %1258 = vmatpush1.msra.mxu0 0.0
  %1259 = vmatprep.subr.mxu0 0.0
  %1260 = vmatpush1.msra.mxu0 0.0
  %1261 = vmatprep.subr.mxu0 0.0
  %1262 = vmatpush1.msra.mxu0 0.0
  %1263 = vmatprep.subr.mxu0 0.0
  %1264 = vmatpush1.msra.mxu0 0.0
  %1265 = vmatprep.subr.mxu0 0.0
  %1266 = vmatpush1.msra.mxu0 0.0
  %1267 = vmatprep.subr.mxu0 0.0
  %1268 = vmatpush1.msra.mxu0 0.0
  %1269 = vmatprep.subr.mxu0 0.0
  %1270 = vmatpush1.msra.mxu0 %v339
  %1271 = vmatprep.subr.mxu0 0.0
  %1272 = vmatpush1.msra.mxu0 %v338
  %1273 = vmatprep.subr.mxu0 0.0
  %1274 = vmatpush1.msra.mxu0 %v337
  %1275 = vmatprep.subr.mxu0 0.0
  %1276 = vmatpush1.msra.mxu0 %v336
  %1277 = vmatprep.subr.mxu0 0.0
  %1278 = vmatpush2.msra.mxu0 0.0
  %1279 = vmatprep.subr.mxu0 0.0
  %1280 = vmatpush2.msra.mxu0 0.0
  %1281 = vmatprep.subr.mxu0 0.0
  %1282 = vmatpush2.msra.mxu0 0.0
  %1283 = vmatprep.subr.mxu0 0.0
  %1284 = vmatpush2.msra.mxu0 0.0
  %1285 = vmatprep.subr.mxu0 0.0
  %1286 = vmatpush2.msra.mxu0 0.0
  %1287 = vmatprep.subr.mxu0 0.0
  %1288 = vmatpush2.msra.mxu0 0.0
  %1289 = vmatprep.subr.mxu0 0.0
  %1290 = vmatpush2.msra.mxu0 0.0
  %1291 = vmatprep.subr.mxu0 0.0
  %1292 = vmatpush2.msra.mxu0 0.0
  %1293 = vmatprep.subr.mxu0 0.0
  %1294 = vmatpush2.msra.mxu0 0.0
  %1295 = vmatprep.subr.mxu0 0.0
  %1296 = vmatpush2.msra.mxu0 0.0
  %1297 = vmatprep.subr.mxu0 0.0
  %1298 = vmatpush2.msra.mxu0 0.0
  %1299 = vmatprep.subr.mxu0 0.0
  %1300 = vmatpush2.msra.mxu0 0.0
  %1301 = vmatprep.subr.mxu0 0.0
  %1302 = vmatpush2.msra.mxu0 0.0
  %1303 = vmatprep.subr.mxu0 0.0
  %1304 = vmatpush2.msra.mxu0 0.0
  %1305 = vmatprep.subr.mxu0 0.0
  %1306 = vmatpush2.msra.mxu0 0.0
  %1307 = vmatprep.subr.mxu0 0.0
  %1308 = vmatpush2.msra.mxu0 0.0
  %1309 = vmatprep.mubr.f32.mxu0 0.0
  %1310 = vmatmul.mubr.f32.gmra.mxu0 %v1243
  %v1311 = vpop.f32.mrf.mxu0
  %v1312 = vadd.f32 0.0, %v1311
  %v1313 = vpop.f32.mrf.mxu0
  %1314 = vdwg.mxu0
  %v1315 = vadd.f32 %v299, %v1312
  %v1316 = vxor.u32 %v1315, 2147483648
  %v1317 = vmul.f32 %v1316, 1.442695
  %v1318 = vpow.pop %v1317
  %v1319 = vadd.f32 %v1318, 1.0
  %v1320 = vrcp.pop %v1319
  %v1321 = vmul.f32 1.0, %v1320
  %v1322 = vtanh.pop %v1315
  %v1323 = vmul.f32 %v1321, %v1231
  %1325 = vrot.lane.b32.xlu0 %v1322, 64
  %v1326 = vpop.permute.xlu0 %1325
  %v1328 = vmul.f32 %v1321, %v1326
  %1330 = vrot.lane.b32.xlu0 %v1328, 32
  %v1331 = vpop.permute.xlu0 %1330
  %v1333 = vadd.f32 %v1323, %v1331
  %v1334 = vtanh.pop %v1333
  %1336 = vrot.lane.b32.xlu0 %v1334, 64
  %v1337 = vpop.permute.xlu0 %1336
  %v1339 = vmul.f32 %v1321, %v1337
  %1341 = vrot.lane.b32.xlu0 %v1339, 32
  %v1342 = vpop.permute.xlu0 %1341
  %1344 = vst.msk [vmem:[#allocation2 + $0x8] sm:$0xff] %vm54, %v1342
  %v1345 = vsel %vm54, %v1342, 0
  %1347 = vmatprep.subr.mxu0 0.0
  %1348 = vmatpush1.msra.mxu0 0.0
  %1349 = vmatprep.subr.mxu0 0.0
  %1350 = vmatpush1.msra.mxu0 0.0
  %1351 = vmatprep.subr.mxu0 0.0
  %1352 = vmatpush1.msra.mxu0 0.0
  %1353 = vmatprep.subr.mxu0 0.0
  %1354 = vmatpush1.msra.mxu0 0.0
  %1355 = vmatprep.subr.mxu0 0.0
  %1356 = vmatpush1.msra.mxu0 0.0
  %1357 = vmatprep.subr.mxu0 0.0
  %1358 = vmatpush1.msra.mxu0 0.0
  %1359 = vmatprep.subr.mxu0 0.0
  %1360 = vmatpush1.msra.mxu0 0.0
  %1361 = vmatprep.subr.mxu0 0.0
  %1362 = vmatpush1.msra.mxu0 0.0
  %1363 = vmatprep.subr.mxu0 0.0
  %1364 = vmatpush1.msra.mxu0 0.0
  %1365 = vmatprep.subr.mxu0 0.0
  %1366 = vmatpush1.msra.mxu0 0.0
  %1367 = vmatprep.subr.mxu0 0.0
  %1368 = vmatpush1.msra.mxu0 0.0
  %1369 = vmatprep.subr.mxu0 0.0
  %1370 = vmatpush1.msra.mxu0 0.0
  %1371 = vmatprep.subr.mxu0 0.0
  %1372 = vmatpush1.msra.mxu0 %v339
  %1373 = vmatprep.subr.mxu0 0.0
  %1374 = vmatpush1.msra.mxu0 %v338
  %1375 = vmatprep.subr.mxu0 0.0
  %1376 = vmatpush1.msra.mxu0 %v337
  %1377 = vmatprep.subr.mxu0 0.0
  %1378 = vmatpush1.msra.mxu0 %v336
  %1379 = vmatprep.subr.mxu0 0.0
  %1380 = vmatpush2.msra.mxu0 0.0
  %1381 = vmatprep.subr.mxu0 0.0
  %1382 = vmatpush2.msra.mxu0 0.0
  %1383 = vmatprep.subr.mxu0 0.0
  %1384 = vmatpush2.msra.mxu0 0.0
  %1385 = vmatprep.subr.mxu0 0.0
  %1386 = vmatpush2.msra.mxu0 0.0
  %1387 = vmatprep.subr.mxu0 0.0
  %1388 = vmatpush2.msra.mxu0 0.0
  %1389 = vmatprep.subr.mxu0 0.0
  %1390 = vmatpush2.msra.mxu0 0.0
  %1391 = vmatprep.subr.mxu0 0.0
  %1392 = vmatpush2.msra.mxu0 0.0
  %1393 = vmatprep.subr.mxu0 0.0
  %1394 = vmatpush2.msra.mxu0 0.0
  %1395 = vmatprep.subr.mxu0 0.0
  %1396 = vmatpush2.msra.mxu0 0.0
  %1397 = vmatprep.subr.mxu0 0.0
  %1398 = vmatpush2.msra.mxu0 0.0
  %1399 = vmatprep.subr.mxu0 0.0
  %1400 = vmatpush2.msra.mxu0 0.0
  %1401 = vmatprep.subr.mxu0 0.0
  %1402 = vmatpush2.msra.mxu0 0.0
  %1403 = vmatprep.subr.mxu0 0.0
  %1404 = vmatpush2.msra.mxu0 0.0
  %1405 = vmatprep.subr.mxu0 0.0
  %1406 = vmatpush2.msra.mxu0 0.0
  %1407 = vmatprep.subr.mxu0 0.0
  %1408 = vmatpush2.msra.mxu0 0.0
  %1409 = vmatprep.subr.mxu0 0.0
  %1410 = vmatpush2.msra.mxu0 0.0
  %1411 = vmatprep.mubr.f32.mxu0 0.0
  %1412 = vmatmul.mubr.f32.gmra.mxu0 %v1345
  %v1413 = vpop.f32.mrf.mxu0
  %v1414 = vadd.f32 0.0, %v1413
  %v1415 = vpop.f32.mrf.mxu0
  %1416 = vdwg.mxu0
  %v1417 = vadd.f32 %v304, %v1414
  %v1418 = vxor.u32 %v1417, 2147483648
  %v1419 = vmul.f32 %v1418, 1.442695
  %v1420 = vpow.pop %v1419
  %v1421 = vadd.f32 %v1420, 1.0
  %v1422 = vrcp.pop %v1421
  %v1423 = vmul.f32 1.0, %v1422
  %v1424 = vtanh.pop %v1417
  %v1425 = vmul.f32 %v1423, %v1333
  %1427 = vrot.lane.b32.xlu0 %v1424, 64
  %v1428 = vpop.permute.xlu0 %1427
  %v1430 = vmul.f32 %v1423, %v1428
  %1432 = vrot.lane.b32.xlu0 %v1430, 32
  %v1433 = vpop.permute.xlu0 %1432
  %v1435 = vadd.f32 %v1425, %v1433
  %v1436 = vtanh.pop %v1435
  %1438 = vrot.lane.b32.xlu0 %v1436, 64
  %v1439 = vpop.permute.xlu0 %1438
  %v1441 = vmul.f32 %v1423, %v1439
  %1443 = vrot.lane.b32.xlu0 %v1441, 32
  %v1444 = vpop.permute.xlu0 %1443
  %1446 = vst.msk [vmem:[#allocation2 + $0x10] sm:$0xff] %vm54, %v1444
  %v1447 = vsel %vm54, %v1444, 0
  %1449 = vmatprep.subr.mxu0 0.0
  %1450 = vmatpush1.msra.mxu0 0.0
  %1451 = vmatprep.subr.mxu0 0.0
  %1452 = vmatpush1.msra.mxu0 0.0
  %1453 = vmatprep.subr.mxu0 0.0
  %1454 = vmatpush1.msra.mxu0 0.0
  %1455 = vmatprep.subr.mxu0 0.0
  %1456 = vmatpush1.msra.mxu0 0.0
  %1457 = vmatprep.subr.mxu0 0.0
  %1458 = vmatpush1.msra.mxu0 0.0
  %1459 = vmatprep.subr.mxu0 0.0
  %1460 = vmatpush1.msra.mxu0 0.0
  %1461 = vmatprep.subr.mxu0 0.0
  %1462 = vmatpush1.msra.mxu0 0.0
  %1463 = vmatprep.subr.mxu0 0.0
  %1464 = vmatpush1.msra.mxu0 0.0
  %1465 = vmatprep.subr.mxu0 0.0
  %1466 = vmatpush1.msra.mxu0 0.0
  %1467 = vmatprep.subr.mxu0 0.0
  %1468 = vmatpush1.msra.mxu0 0.0
  %1469 = vmatprep.subr.mxu0 0.0
  %1470 = vmatpush1.msra.mxu0 0.0
  %1471 = vmatprep.subr.mxu0 0.0
  %1472 = vmatpush1.msra.mxu0 0.0
  %1473 = vmatprep.subr.mxu0 0.0
  %1474 = vmatpush1.msra.mxu0 %v339
  %1475 = vmatprep.subr.mxu0 0.0
  %1476 = vmatpush1.msra.mxu0 %v338
  %1477 = vmatprep.subr.mxu0 0.0
  %1478 = vmatpush1.msra.mxu0 %v337
  %1479 = vmatprep.subr.mxu0 0.0
  %1480 = vmatpush1.msra.mxu0 %v336
  %1481 = vmatprep.subr.mxu0 0.0
  %1482 = vmatpush2.msra.mxu0 0.0
  %1483 = vmatprep.subr.mxu0 0.0
  %1484 = vmatpush2.msra.mxu0 0.0
  %1485 = vmatprep.subr.mxu0 0.0
  %1486 = vmatpush2.msra.mxu0 0.0
  %1487 = vmatprep.subr.mxu0 0.0
  %1488 = vmatpush2.msra.mxu0 0.0
  %1489 = vmatprep.subr.mxu0 0.0
  %1490 = vmatpush2.msra.mxu0 0.0
  %1491 = vmatprep.subr.mxu0 0.0
  %1492 = vmatpush2.msra.mxu0 0.0
  %1493 = vmatprep.subr.mxu0 0.0
  %1494 = vmatpush2.msra.mxu0 0.0
  %1495 = vmatprep.subr.mxu0 0.0
  %1496 = vmatpush2.msra.mxu0 0.0
  %1497 = vmatprep.subr.mxu0 0.0
  %1498 = vmatpush2.msra.mxu0 0.0
  %1499 = vmatprep.subr.mxu0 0.0
  %1500 = vmatpush2.msra.mxu0 0.0
  %1501 = vmatprep.subr.mxu0 0.0
  %1502 = vmatpush2.msra.mxu0 0.0
  %1503 = vmatprep.subr.mxu0 0.0
  %1504 = vmatpush2.msra.mxu0 0.0
  %1505 = vmatprep.subr.mxu0 0.0
  %1506 = vmatpush2.msra.mxu0 0.0
  %1507 = vmatprep.subr.mxu0 0.0
  %1508 = vmatpush2.msra.mxu0 0.0
  %1509 = vmatprep.subr.mxu0 0.0
  %1510 = vmatpush2.msra.mxu0 0.0
  %1511 = vmatprep.subr.mxu0 0.0
  %1512 = vmatpush2.msra.mxu0 0.0
  %1513 = vmatprep.mubr.f32.mxu0 0.0
  %1514 = vmatmul.mubr.f32.gmra.mxu0 %v1447
  %v1515 = vpop.f32.mrf.mxu0
  %v1516 = vadd.f32 0.0, %v1515
  %v1517 = vpop.f32.mrf.mxu0
  %1518 = vdwg.mxu0
  %v1519 = vadd.f32 %v309, %v1516
  %v1520 = vxor.u32 %v1519, 2147483648
  %v1521 = vmul.f32 %v1520, 1.442695
  %v1522 = vpow.pop %v1521
  %v1523 = vadd.f32 %v1522, 1.0
  %v1524 = vrcp.pop %v1523
  %v1525 = vmul.f32 1.0, %v1524
  %v1526 = vtanh.pop %v1519
  %v1527 = vmul.f32 %v1525, %v1435
  %1529 = vrot.lane.b32.xlu0 %v1526, 64
  %v1530 = vpop.permute.xlu0 %1529
  %v1532 = vmul.f32 %v1525, %v1530
  %1534 = vrot.lane.b32.xlu0 %v1532, 32
  %v1535 = vpop.permute.xlu0 %1534
  %v1537 = vadd.f32 %v1527, %v1535
  %v1538 = vtanh.pop %v1537
  %1540 = vrot.lane.b32.xlu0 %v1538, 64
  %v1541 = vpop.permute.xlu0 %1540
  %v1543 = vmul.f32 %v1525, %v1541
  %1545 = vrot.lane.b32.xlu0 %v1543, 32
  %v1546 = vpop.permute.xlu0 %1545
  %1548 = vst.msk [vmem:[#allocation2 + $0x18] sm:$0xff] %vm54, %v1546
  %v1549 = vsel %vm54, %v1546, 0
  %1551 = vmatprep.subr.mxu0 0.0
  %1552 = vmatpush1.msra.mxu0 0.0
  %1553 = vmatprep.subr.mxu0 0.0
  %1554 = vmatpush1.msra.mxu0 0.0
  %1555 = vmatprep.subr.mxu0 0.0
  %1556 = vmatpush1.msra.mxu0 0.0
  %1557 = vmatprep.subr.mxu0 0.0
  %1558 = vmatpush1.msra.mxu0 0.0
  %1559 = vmatprep.subr.mxu0 0.0
  %1560 = vmatpush1.msra.mxu0 0.0
  %1561 = vmatprep.subr.mxu0 0.0
  %1562 = vmatpush1.msra.mxu0 0.0
  %1563 = vmatprep.subr.mxu0 0.0
  %1564 = vmatpush1.msra.mxu0 0.0
  %1565 = vmatprep.subr.mxu0 0.0
  %1566 = vmatpush1.msra.mxu0 0.0
  %1567 = vmatprep.subr.mxu0 0.0
  %1568 = vmatpush1.msra.mxu0 0.0
  %1569 = vmatprep.subr.mxu0 0.0
  %1570 = vmatpush1.msra.mxu0 0.0
  %1571 = vmatprep.subr.mxu0 0.0
  %1572 = vmatpush1.msra.mxu0 0.0
  %1573 = vmatprep.subr.mxu0 0.0
  %1574 = vmatpush1.msra.mxu0 0.0
  %1575 = vmatprep.subr.mxu0 0.0
  %1576 = vmatpush1.msra.mxu0 %v339
  %1577 = vmatprep.subr.mxu0 0.0
  %1578 = vmatpush1.msra.mxu0 %v338
  %1579 = vmatprep.subr.mxu0 0.0
  %1580 = vmatpush1.msra.mxu0 %v337
  %1581 = vmatprep.subr.mxu0 0.0
  %1582 = vmatpush1.msra.mxu0 %v336
  %1583 = vmatprep.subr.mxu0 0.0
  %1584 = vmatpush2.msra.mxu0 0.0
  %1585 = vmatprep.subr.mxu0 0.0
  %1586 = vmatpush2.msra.mxu0 0.0
  %1587 = vmatprep.subr.mxu0 0.0
  %1588 = vmatpush2.msra.mxu0 0.0
  %1589 = vmatprep.subr.mxu0 0.0
  %1590 = vmatpush2.msra.mxu0 0.0
  %1591 = vmatprep.subr.mxu0 0.0
  %1592 = vmatpush2.msra.mxu0 0.0
  %1593 = vmatprep.subr.mxu0 0.0
  %1594 = vmatpush2.msra.mxu0 0.0
  %1595 = vmatprep.subr.mxu0 0.0
  %1596 = vmatpush2.msra.mxu0 0.0
  %1597 = vmatprep.subr.mxu0 0.0
  %1598 = vmatpush2.msra.mxu0 0.0
  %1599 = vmatprep.subr.mxu0 0.0
  %1600 = vmatpush2.msra.mxu0 0.0
  %1601 = vmatprep.subr.mxu0 0.0
  %1602 = vmatpush2.msra.mxu0 0.0
  %1603 = vmatprep.subr.mxu0 0.0
  %1604 = vmatpush2.msra.mxu0 0.0
  %1605 = vmatprep.subr.mxu0 0.0
  %1606 = vmatpush2.msra.mxu0 0.0
  %1607 = vmatprep.subr.mxu0 0.0
  %1608 = vmatpush2.msra.mxu0 0.0
  %1609 = vmatprep.subr.mxu0 0.0
  %1610 = vmatpush2.msra.mxu0 0.0
  %1611 = vmatprep.subr.mxu0 0.0
  %1612 = vmatpush2.msra.mxu0 0.0
  %1613 = vmatprep.subr.mxu0 0.0
  %1614 = vmatpush2.msra.mxu0 0.0
  %1615 = vmatprep.mubr.f32.mxu0 0.0
  %1616 = vmatmul.mubr.f32.gmra.mxu0 %v1549
  %v1617 = vpop.f32.mrf.mxu0
  %v1618 = vadd.f32 0.0, %v1617
  %v1619 = vpop.f32.mrf.mxu0
  %1620 = vdwg.mxu0
  %v1621 = vadd.f32 %v314, %v1618
  %v1622 = vxor.u32 %v1621, 2147483648
  %v1623 = vmul.f32 %v1622, 1.442695
  %v1624 = vpow.pop %v1623
  %v1625 = vadd.f32 %v1624, 1.0
  %v1626 = vrcp.pop %v1625
  %v1627 = vmul.f32 1.0, %v1626
  %v1628 = vtanh.pop %v1621
  %v1629 = vmul.f32 %v1627, %v1537
  %1631 = vrot.lane.b32.xlu0 %v1628, 64
  %v1632 = vpop.permute.xlu0 %1631
  %v1634 = vmul.f32 %v1627, %v1632
  %1636 = vrot.lane.b32.xlu0 %v1634, 32
  %v1637 = vpop.permute.xlu0 %1636
  %v1639 = vadd.f32 %v1629, %v1637
  %v1640 = vtanh.pop %v1639
  %1642 = vrot.lane.b32.xlu0 %v1640, 64
  %v1643 = vpop.permute.xlu0 %1642
  %v1645 = vmul.f32 %v1627, %v1643
  %1647 = vrot.lane.b32.xlu0 %v1645, 32
  %v1648 = vpop.permute.xlu0 %1647
  %1650 = vst.msk [vmem:[#allocation2 + $0x20] sm:$0xff] %vm54, %v1648
  %v1651 = vsel %vm54, %v1648, 0
  %1653 = vmatprep.subr.mxu0 0.0
  %1654 = vmatpush1.msra.mxu0 0.0
  %1655 = vmatprep.subr.mxu0 0.0
  %1656 = vmatpush1.msra.mxu0 0.0
  %1657 = vmatprep.subr.mxu0 0.0
  %1658 = vmatpush1.msra.mxu0 0.0
  %1659 = vmatprep.subr.mxu0 0.0
  %1660 = vmatpush1.msra.mxu0 0.0
  %1661 = vmatprep.subr.mxu0 0.0
  %1662 = vmatpush1.msra.mxu0 0.0
  %1663 = vmatprep.subr.mxu0 0.0
  %1664 = vmatpush1.msra.mxu0 0.0
  %1665 = vmatprep.subr.mxu0 0.0
  %1666 = vmatpush1.msra.mxu0 0.0
  %1667 = vmatprep.subr.mxu0 0.0
  %1668 = vmatpush1.msra.mxu0 0.0
  %1669 = vmatprep.subr.mxu0 0.0
  %1670 = vmatpush1.msra.mxu0 0.0
  %1671 = vmatprep.subr.mxu0 0.0
  %1672 = vmatpush1.msra.mxu0 0.0
  %1673 = vmatprep.subr.mxu0 0.0
  %1674 = vmatpush1.msra.mxu0 0.0
  %1675 = vmatprep.subr.mxu0 0.0
  %1676 = vmatpush1.msra.mxu0 0.0
  %1677 = vmatprep.subr.mxu0 0.0
  %1678 = vmatpush1.msra.mxu0 %v339
  %1679 = vmatprep.subr.mxu0 0.0
  %1680 = vmatpush1.msra.mxu0 %v338
  %1681 = vmatprep.subr.mxu0 0.0
  %1682 = vmatpush1.msra.mxu0 %v337
  %1683 = vmatprep.subr.mxu0 0.0
  %1684 = vmatpush1.msra.mxu0 %v336
  %1685 = vmatprep.subr.mxu0 0.0
  %1686 = vmatpush2.msra.mxu0 0.0
  %1687 = vmatprep.subr.mxu0 0.0
  %1688 = vmatpush2.msra.mxu0 0.0
  %1689 = vmatprep.subr.mxu0 0.0
  %1690 = vmatpush2.msra.mxu0 0.0
  %1691 = vmatprep.subr.mxu0 0.0
  %1692 = vmatpush2.msra.mxu0 0.0
  %1693 = vmatprep.subr.mxu0 0.0
  %1694 = vmatpush2.msra.mxu0 0.0
  %1695 = vmatprep.subr.mxu0 0.0
  %1696 = vmatpush2.msra.mxu0 0.0
  %1697 = vmatprep.subr.mxu0 0.0
  %1698 = vmatpush2.msra.mxu0 0.0
  %1699 = vmatprep.subr.mxu0 0.0
  %1700 = vmatpush2.msra.mxu0 0.0
  %1701 = vmatprep.subr.mxu0 0.0
  %1702 = vmatpush2.msra.mxu0 0.0
  %1703 = vmatprep.subr.mxu0 0.0
  %1704 = vmatpush2.msra.mxu0 0.0
  %1705 = vmatprep.subr.mxu0 0.0
  %1706 = vmatpush2.msra.mxu0 0.0
  %1707 = vmatprep.subr.mxu0 0.0
  %1708 = vmatpush2.msra.mxu0 0.0
  %1709 = vmatprep.subr.mxu0 0.0
  %1710 = vmatpush2.msra.mxu0 0.0
  %1711 = vmatprep.subr.mxu0 0.0
  %1712 = vmatpush2.msra.mxu0 0.0
  %1713 = vmatprep.subr.mxu0 0.0
  %1714 = vmatpush2.msra.mxu0 0.0
  %1715 = vmatprep.subr.mxu0 0.0
  %1716 = vmatpush2.msra.mxu0 0.0
  %1717 = vmatprep.mubr.f32.mxu0 0.0
  %1718 = vmatmul.mubr.f32.gmra.mxu0 %v1651
  %v1719 = vpop.f32.mrf.mxu0
  %v1720 = vadd.f32 0.0, %v1719
  %v1721 = vpop.f32.mrf.mxu0
  %1722 = vdwg.mxu0
  %v1723 = vadd.f32 %v319, %v1720
  %v1724 = vxor.u32 %v1723, 2147483648
  %v1725 = vmul.f32 %v1724, 1.442695
  %v1726 = vpow.pop %v1725
  %v1727 = vadd.f32 %v1726, 1.0
  %v1728 = vrcp.pop %v1727
  %v1729 = vmul.f32 1.0, %v1728
  %v1730 = vtanh.pop %v1723
  %v1731 = vmul.f32 %v1729, %v1639
  %1733 = vrot.lane.b32.xlu0 %v1730, 64
  %v1734 = vpop.permute.xlu0 %1733
  %v1736 = vmul.f32 %v1729, %v1734
  %1738 = vrot.lane.b32.xlu0 %v1736, 32
  %v1739 = vpop.permute.xlu0 %1738
  %v1741 = vadd.f32 %v1731, %v1739
  %v1742 = vtanh.pop %v1741
  %1744 = vrot.lane.b32.xlu0 %v1742, 64
  %v1745 = vpop.permute.xlu0 %1744
  %v1747 = vmul.f32 %v1729, %v1745
  %1749 = vrot.lane.b32.xlu0 %v1747, 32
  %v1750 = vpop.permute.xlu0 %1749
  %1752 = vst.msk [vmem:[#allocation2 + $0x28] sm:$0xff] %vm54, %v1750
  %v1753 = vsel %vm54, %v1750, 0
  %1755 = vmatprep.subr.mxu0 0.0
  %1756 = vmatpush1.msra.mxu0 0.0
  %1757 = vmatprep.subr.mxu0 0.0
  %1758 = vmatpush1.msra.mxu0 0.0
  %1759 = vmatprep.subr.mxu0 0.0
  %1760 = vmatpush1.msra.mxu0 0.0
  %1761 = vmatprep.subr.mxu0 0.0
  %1762 = vmatpush1.msra.mxu0 0.0
  %1763 = vmatprep.subr.mxu0 0.0
  %1764 = vmatpush1.msra.mxu0 0.0
  %1765 = vmatprep.subr.mxu0 0.0
  %1766 = vmatpush1.msra.mxu0 0.0
  %1767 = vmatprep.subr.mxu0 0.0
  %1768 = vmatpush1.msra.mxu0 0.0
  %1769 = vmatprep.subr.mxu0 0.0
  %1770 = vmatpush1.msra.mxu0 0.0
  %1771 = vmatprep.subr.mxu0 0.0
  %1772 = vmatpush1.msra.mxu0 0.0
  %1773 = vmatprep.subr.mxu0 0.0
  %1774 = vmatpush1.msra.mxu0 0.0
  %1775 = vmatprep.subr.mxu0 0.0
  %1776 = vmatpush1.msra.mxu0 0.0
  %1777 = vmatprep.subr.mxu0 0.0
  %1778 = vmatpush1.msra.mxu0 0.0
  %1779 = vmatprep.subr.mxu0 0.0
  %1780 = vmatpush1.msra.mxu0 %v339
  %1781 = vmatprep.subr.mxu0 0.0
  %1782 = vmatpush1.msra.mxu0 %v338
  %1783 = vmatprep.subr.mxu0 0.0
  %1784 = vmatpush1.msra.mxu0 %v337
  %1785 = vmatprep.subr.mxu0 0.0
  %1786 = vmatpush1.msra.mxu0 %v336
  %1787 = vmatprep.subr.mxu0 0.0
  %1788 = vmatpush2.msra.mxu0 0.0
  %1789 = vmatprep.subr.mxu0 0.0
  %1790 = vmatpush2.msra.mxu0 0.0
  %1791 = vmatprep.subr.mxu0 0.0
  %1792 = vmatpush2.msra.mxu0 0.0
  %1793 = vmatprep.subr.mxu0 0.0
  %1794 = vmatpush2.msra.mxu0 0.0
  %1795 = vmatprep.subr.mxu0 0.0
  %1796 = vmatpush2.msra.mxu0 0.0
  %1797 = vmatprep.subr.mxu0 0.0
  %1798 = vmatpush2.msra.mxu0 0.0
  %1799 = vmatprep.subr.mxu0 0.0
  %1800 = vmatpush2.msra.mxu0 0.0
  %1801 = vmatprep.subr.mxu0 0.0
  %1802 = vmatpush2.msra.mxu0 0.0
  %1803 = vmatprep.subr.mxu0 0.0
  %1804 = vmatpush2.msra.mxu0 0.0
  %1805 = vmatprep.subr.mxu0 0.0
  %1806 = vmatpush2.msra.mxu0 0.0
  %1807 = vmatprep.subr.mxu0 0.0
  %1808 = vmatpush2.msra.mxu0 0.0
  %1809 = vmatprep.subr.mxu0 0.0
  %1810 = vmatpush2.msra.mxu0 0.0
  %1811 = vmatprep.subr.mxu0 0.0
  %1812 = vmatpush2.msra.mxu0 0.0
  %1813 = vmatprep.subr.mxu0 0.0
  %1814 = vmatpush2.msra.mxu0 0.0
  %1815 = vmatprep.subr.mxu0 0.0
  %1816 = vmatpush2.msra.mxu0 0.0
  %1817 = vmatprep.subr.mxu0 0.0
  %1818 = vmatpush2.msra.mxu0 0.0
  %1819 = vmatprep.mubr.f32.mxu0 0.0
  %1820 = vmatmul.mubr.f32.gmra.mxu0 %v1753
  %v1821 = vpop.f32.mrf.mxu0
  %v1822 = vadd.f32 0.0, %v1821
  %v1823 = vpop.f32.mrf.mxu0
  %1824 = vdwg.mxu0
  %v1825 = vadd.f32 %v324, %v1822
  %v1826 = vxor.u32 %v1825, 2147483648
  %v1827 = vmul.f32 %v1826, 1.442695
  %v1828 = vpow.pop %v1827
  %v1829 = vadd.f32 %v1828, 1.0
  %v1830 = vrcp.pop %v1829
  %v1831 = vmul.f32 1.0, %v1830
  %v1832 = vtanh.pop %v1825
  %v1833 = vmul.f32 %v1831, %v1741
  %1835 = vrot.lane.b32.xlu0 %v1832, 64
  %v1836 = vpop.permute.xlu0 %1835
  %v1838 = vmul.f32 %v1831, %v1836
  %1840 = vrot.lane.b32.xlu0 %v1838, 32
  %v1841 = vpop.permute.xlu0 %1840
  %v1843 = vadd.f32 %v1833, %v1841
  %v1844 = vtanh.pop %v1843
  %1846 = vrot.lane.b32.xlu0 %v1844, 64
  %v1847 = vpop.permute.xlu0 %1846
  %v1849 = vmul.f32 %v1831, %v1847
  %1851 = vrot.lane.b32.xlu0 %v1849, 32
  %v1852 = vpop.permute.xlu0 %1851
  %1854 = vst.msk [vmem:[#allocation2 + $0x30] sm:$0xff] %vm54, %v1852
  %v1855 = vsel %vm54, %v1852, 0
  %1857 = vmatprep.subr.mxu0 0.0
  %1858 = vmatpush1.msra.mxu0 0.0
  %1859 = vmatprep.subr.mxu0 0.0
  %1860 = vmatpush1.msra.mxu0 0.0
  %1861 = vmatprep.subr.mxu0 0.0
  %1862 = vmatpush1.msra.mxu0 0.0
  %1863 = vmatprep.subr.mxu0 0.0
  %1864 = vmatpush1.msra.mxu0 0.0
  %1865 = vmatprep.subr.mxu0 0.0
  %1866 = vmatpush1.msra.mxu0 0.0
  %1867 = vmatprep.subr.mxu0 0.0
  %1868 = vmatpush1.msra.mxu0 0.0
  %1869 = vmatprep.subr.mxu0 0.0
  %1870 = vmatpush1.msra.mxu0 0.0
  %1871 = vmatprep.subr.mxu0 0.0
  %1872 = vmatpush1.msra.mxu0 0.0
  %1873 = vmatprep.subr.mxu0 0.0
  %1874 = vmatpush1.msra.mxu0 0.0
  %1875 = vmatprep.subr.mxu0 0.0
  %1876 = vmatpush1.msra.mxu0 0.0
  %1877 = vmatprep.subr.mxu0 0.0
  %1878 = vmatpush1.msra.mxu0 0.0
  %1879 = vmatprep.subr.mxu0 0.0
  %1880 = vmatpush1.msra.mxu0 0.0
  %1881 = vmatprep.subr.mxu0 0.0
  %1882 = vmatpush1.msra.mxu0 %v339
  %1883 = vmatprep.subr.mxu0 0.0
  %1884 = vmatpush1.msra.mxu0 %v338
  %1885 = vmatprep.subr.mxu0 0.0
  %1886 = vmatpush1.msra.mxu0 %v337
  %1887 = vmatprep.subr.mxu0 0.0
  %1888 = vmatpush1.msra.mxu0 %v336
  %1889 = vmatprep.subr.mxu0 0.0
  %1890 = vmatpush2.msra.mxu0 0.0
  %1891 = vmatprep.subr.mxu0 0.0
  %1892 = vmatpush2.msra.mxu0 0.0
  %1893 = vmatprep.subr.mxu0 0.0
  %1894 = vmatpush2.msra.mxu0 0.0
  %1895 = vmatprep.subr.mxu0 0.0
  %1896 = vmatpush2.msra.mxu0 0.0
  %1897 = vmatprep.subr.mxu0 0.0
  %1898 = vmatpush2.msra.mxu0 0.0
  %1899 = vmatprep.subr.mxu0 0.0
  %1900 = vmatpush2.msra.mxu0 0.0
  %1901 = vmatprep.subr.mxu0 0.0
  %1902 = vmatpush2.msra.mxu0 0.0
  %1903 = vmatprep.subr.mxu0 0.0
  %1904 = vmatpush2.msra.mxu0 0.0
  %1905 = vmatprep.subr.mxu0 0.0
  %1906 = vmatpush2.msra.mxu0 0.0
  %1907 = vmatprep.subr.mxu0 0.0
  %1908 = vmatpush2.msra.mxu0 0.0
  %1909 = vmatprep.subr.mxu0 0.0
  %1910 = vmatpush2.msra.mxu0 0.0
  %1911 = vmatprep.subr.mxu0 0.0
  %1912 = vmatpush2.msra.mxu0 0.0
  %1913 = vmatprep.subr.mxu0 0.0
  %1914 = vmatpush2.msra.mxu0 0.0
  %1915 = vmatprep.subr.mxu0 0.0
  %1916 = vmatpush2.msra.mxu0 0.0
  %1917 = vmatprep.subr.mxu0 0.0
  %1918 = vmatpush2.msra.mxu0 0.0
  %1919 = vmatprep.subr.mxu0 0.0
  %1920 = vmatpush2.msra.mxu0 0.0
  %1921 = vmatprep.mubr.f32.mxu0 0.0
  %1922 = vmatmul.mubr.f32.gmra.mxu0 %v1855
  %v1923 = vpop.f32.mrf.mxu0
  %v1924 = vadd.f32 0.0, %v1923
  %v1925 = vpop.f32.mrf.mxu0
  %1926 = vdwg.mxu0
  %v1927 = vadd.f32 %v329, %v1924
  %v1928 = vxor.u32 %v1927, 2147483648
  %v1929 = vmul.f32 %v1928, 1.442695
  %v1930 = vpow.pop %v1929
  %v1931 = vadd.f32 %v1930, 1.0
  %v1932 = vrcp.pop %v1931
  %v1933 = vmul.f32 1.0, %v1932
  %v1934 = vtanh.pop %v1927
  %v1935 = vmul.f32 %v1933, %v1843
  %1937 = vrot.lane.b32.xlu0 %v1934, 64
  %v1938 = vpop.permute.xlu0 %1937
  %v1940 = vmul.f32 %v1933, %v1938
  %1942 = vrot.lane.b32.xlu0 %v1940, 32
  %v1943 = vpop.permute.xlu0 %1942
  %v1945 = vadd.f32 %v1935, %v1943
  %v1946 = vtanh.pop %v1945
  %1948 = vrot.lane.b32.xlu0 %v1946, 64
  %v1949 = vpop.permute.xlu0 %1948
  %v1951 = vmul.f32 %v1933, %v1949
  %1953 = vrot.lane.b32.xlu0 %v1951, 32
  %v1954 = vpop.permute.xlu0 %1953
  %1956 = vst.msk [vmem:[#allocation2 + $0x38] sm:$0xff] %vm54, %v1954
  %v1957 = vld [vmem:[#allocation2] sm:$0xff]
  %v1958 = vld [vmem:[#allocation2 + $0x8] sm:$0xff]
  %v1959 = vld [vmem:[#allocation2 + $0x10] sm:$0xff]
  %v1960 = vld [vmem:[#allocation2 + $0x18] sm:$0xff]
  %v1961 = vld [vmem:[#allocation2 + $0x20] sm:$0xff]
  %v1962 = vld [vmem:[#allocation2 + $0x28] sm:$0xff]
  %v1963 = vld [vmem:[#allocation2 + $0x30] sm:$0xff]
  %v1964 = vld [vmem:[#allocation2 + $0x38] sm:$0xff]
  %v1965 = vld [vmem:[%s8] sm:$0xff]
  %v1966 = vld [vmem:[%s8 + $0x8] sm:$0xff]
  %v1967 = vld [vmem:[%s8 + $0x10] sm:$0xff]
  %v1968 = vld [vmem:[%s8 + $0x18] sm:$0xff]
  %v1969 = vld [vmem:[%s9] sm:$0x1]
  %v1971 = vlaneseq
  %v1972 = vshrl.u32 %v1971, 7
  %v1973 = vsub.s32 0, %v1972
  %v1974 = vrot.slane %v1969, %v1973
  %v1977 = vsel %vm54, %v1957, 0
  %v1980 = vsel %vm54, %v1958, 0
  %v1983 = vsel %vm54, %v1959, 0
  %v1986 = vsel %vm54, %v1960, 0
  %v1989 = vsel %vm54, %v1961, 0
  %v1992 = vsel %vm54, %v1962, 0
  %v1995 = vsel %vm54, %v1963, 0
  %v1998 = vsel %vm54, %v1964, 0
  %2000 = vmatprep.subr.mxu0 0.0
  %2001 = vmatpush1.msra.mxu0 0.0
  %2002 = vmatprep.subr.mxu0 0.0
  %2003 = vmatpush1.msra.mxu0 0.0
  %2004 = vmatprep.subr.mxu0 0.0
  %2005 = vmatpush1.msra.mxu0 0.0
  %2006 = vmatprep.subr.mxu0 0.0
  %2007 = vmatpush1.msra.mxu0 0.0
  %2008 = vmatprep.subr.mxu0 0.0
  %2009 = vmatpush1.msra.mxu0 0.0
  %2010 = vmatprep.subr.mxu0 0.0
  %2011 = vmatpush1.msra.mxu0 0.0
  %2012 = vmatprep.subr.mxu0 0.0
  %2013 = vmatpush1.msra.mxu0 0.0
  %2014 = vmatprep.subr.mxu0 0.0
  %2015 = vmatpush1.msra.mxu0 0.0
  %2016 = vmatprep.subr.mxu0 0.0
  %2017 = vmatpush1.msra.mxu0 0.0
  %2018 = vmatprep.subr.mxu0 0.0
  %2019 = vmatpush1.msra.mxu0 0.0
  %2020 = vmatprep.subr.mxu0 0.0
  %2021 = vmatpush1.msra.mxu0 0.0
  %2022 = vmatprep.subr.mxu0 0.0
  %2023 = vmatpush1.msra.mxu0 0.0
  %2024 = vmatprep.subr.mxu0 0.0
  %2025 = vmatpush1.msra.mxu0 %v1968
  %2026 = vmatprep.subr.mxu0 0.0
  %2027 = vmatpush1.msra.mxu0 %v1967
  %2028 = vmatprep.subr.mxu0 0.0
  %2029 = vmatpush1.msra.mxu0 %v1966
  %2030 = vmatprep.subr.mxu0 0.0
  %2031 = vmatpush1.msra.mxu0 %v1965
  %2032 = vmatprep.subr.mxu0 0.0
  %2033 = vmatpush2.msra.mxu0 0.0
  %2034 = vmatprep.subr.mxu0 0.0
  %2035 = vmatpush2.msra.mxu0 0.0
  %2036 = vmatprep.subr.mxu0 0.0
  %2037 = vmatpush2.msra.mxu0 0.0
  %2038 = vmatprep.subr.mxu0 0.0
  %2039 = vmatpush2.msra.mxu0 0.0
  %2040 = vmatprep.subr.mxu0 0.0
  %2041 = vmatpush2.msra.mxu0 0.0
  %2042 = vmatprep.subr.mxu0 0.0
  %2043 = vmatpush2.msra.mxu0 0.0
  %2044 = vmatprep.subr.mxu0 0.0
  %2045 = vmatpush2.msra.mxu0 0.0
  %2046 = vmatprep.subr.mxu0 0.0
  %2047 = vmatpush2.msra.mxu0 0.0
  %2048 = vmatprep.subr.mxu0 0.0
  %2049 = vmatpush2.msra.mxu0 0.0
  %2050 = vmatprep.subr.mxu0 0.0
  %2051 = vmatpush2.msra.mxu0 0.0
  %2052 = vmatprep.subr.mxu0 0.0
  %2053 = vmatpush2.msra.mxu0 0.0
  %2054 = vmatprep.subr.mxu0 0.0
  %2055 = vmatpush2.msra.mxu0 0.0
  %2056 = vmatprep.subr.mxu0 0.0
  %2057 = vmatpush2.msra.mxu0 0.0
  %2058 = vmatprep.subr.mxu0 0.0
  %2059 = vmatpush2.msra.mxu0 0.0
  %2060 = vmatprep.subr.mxu0 0.0
  %2061 = vmatpush2.msra.mxu0 0.0
  %2062 = vmatprep.subr.mxu0 0.0
  %2063 = vmatpush2.msra.mxu0 0.0
  %2064 = vmatprep.mubr.f32.mxu0 0.0
  %2065 = vmatmul.mubr.f32.gmra.mxu0 %v1977
  %v2066 = vpop.f32.mrf.mxu0
  %v2067 = vadd.f32 %v1974, %v2066
  %v2068 = vpop.f32.mrf.mxu0
  %2069 = vmatprep.mubr.f32.mxu0 0.0
  %2070 = vmatmul.mubr.f32.gmra.mxu0 %v1980
  %v2071 = vpop.f32.mrf.mxu0
  %v2072 = vadd.f32 %v1974, %v2071
  %v2073 = vpop.f32.mrf.mxu0
  %2074 = vmatprep.mubr.f32.mxu0 0.0
  %2075 = vmatmul.mubr.f32.gmra.mxu0 %v1983
  %v2076 = vpop.f32.mrf.mxu0
  %v2077 = vadd.f32 %v1974, %v2076
  %v2078 = vpop.f32.mrf.mxu0
  %2079 = vmatprep.mubr.f32.mxu0 0.0
  %2080 = vmatmul.mubr.f32.gmra.mxu0 %v1986
  %v2081 = vpop.f32.mrf.mxu0
  %v2082 = vadd.f32 %v1974, %v2081
  %v2083 = vpop.f32.mrf.mxu0
  %2084 = vmatprep.mubr.f32.mxu0 0.0
  %2085 = vmatmul.mubr.f32.gmra.mxu0 %v1989
  %v2086 = vpop.f32.mrf.mxu0
  %v2087 = vadd.f32 %v1974, %v2086
  %v2088 = vpop.f32.mrf.mxu0
  %2089 = vmatprep.mubr.f32.mxu0 0.0
  %2090 = vmatmul.mubr.f32.gmra.mxu0 %v1992
  %v2091 = vpop.f32.mrf.mxu0
  %v2092 = vadd.f32 %v1974, %v2091
  %v2093 = vpop.f32.mrf.mxu0
  %2094 = vmatprep.mubr.f32.mxu0 0.0
  %2095 = vmatmul.mubr.f32.gmra.mxu0 %v1995
  %v2096 = vpop.f32.mrf.mxu0
  %v2097 = vadd.f32 %v1974, %v2096
  %v2098 = vpop.f32.mrf.mxu0
  %2099 = vmatprep.mubr.f32.mxu0 0.0
  %2100 = vmatmul.mubr.f32.gmra.mxu0 %v1998
  %v2101 = vpop.f32.mrf.mxu0
  %v2102 = vadd.f32 %v1974, %v2101
  %v2103 = vpop.f32.mrf.mxu0
  %2104 = vdwg.mxu0
  %2105 = vmax.xlane.f32.xlu0 %v2067
  %v2106 = vpop.xlane.xlu0 %2105
  %2107 = vmax.xlane.f32.xlu0 %v2072
  %v2108 = vpop.xlane.xlu0 %2107
  %2109 = vmax.xlane.f32.xlu0 %v2077
  %v2110 = vpop.xlane.xlu0 %2109
  %2111 = vmax.xlane.f32.xlu0 %v2082
  %v2112 = vpop.xlane.xlu0 %2111
  %2113 = vmax.xlane.f32.xlu0 %v2087
  %v2114 = vpop.xlane.xlu0 %2113
  %2115 = vmax.xlane.f32.xlu0 %v2092
  %v2116 = vpop.xlane.xlu0 %2115
  %2117 = vmax.xlane.f32.xlu0 %v2097
  %v2118 = vpop.xlane.xlu0 %2117
  %2119 = vmax.xlane.f32.xlu0 %v2102
  %v2120 = vpop.xlane.xlu0 %2119
  %v2121 = vsub.f32 %v2067, %v2106
  %v2122 = vsub.f32 %v2072, %v2108
  %v2123 = vsub.f32 %v2077, %v2110
  %v2124 = vsub.f32 %v2082, %v2112
  %v2125 = vsub.f32 %v2087, %v2114
  %v2126 = vsub.f32 %v2092, %v2116
  %v2127 = vsub.f32 %v2097, %v2118
  %v2128 = vsub.f32 %v2102, %v2120
  %v2129 = vmul.f32 %v2121, 1.442695
  %v2130 = vpow.pop %v2129
  %v2131 = vmul.f32 %v2122, 1.442695
  %v2132 = vpow.pop %v2131
  %v2133 = vmul.f32 %v2123, 1.442695
  %v2134 = vpow.pop %v2133
  %v2135 = vmul.f32 %v2124, 1.442695
  %v2136 = vpow.pop %v2135
  %v2137 = vmul.f32 %v2125, 1.442695
  %v2138 = vpow.pop %v2137
  %v2139 = vmul.f32 %v2126, 1.442695
  %v2140 = vpow.pop %v2139
  %v2141 = vmul.f32 %v2127, 1.442695
  %v2142 = vpow.pop %v2141
  %v2143 = vmul.f32 %v2128, 1.442695
  %v2144 = vpow.pop %v2143
  %2145 = vadd.xlane.f32.xlu0 %v2130
  %v2146 = vpop.xlane.xlu0 %2145
  %2147 = vadd.xlane.f32.xlu0 %v2132
  %v2148 = vpop.xlane.xlu0 %2147
  %2149 = vadd.xlane.f32.xlu0 %v2134
  %v2150 = vpop.xlane.xlu0 %2149
  %2151 = vadd.xlane.f32.xlu0 %v2136
  %v2152 = vpop.xlane.xlu0 %2151
  %2153 = vadd.xlane.f32.xlu0 %v2138
  %v2154 = vpop.xlane.xlu0 %2153
  %2155 = vadd.xlane.f32.xlu0 %v2140
  %v2156 = vpop.xlane.xlu0 %2155
  %2157 = vadd.xlane.f32.xlu0 %v2142
  %v2158 = vpop.xlane.xlu0 %2157
  %2159 = vadd.xlane.f32.xlu0 %v2144
  %v2160 = vpop.xlane.xlu0 %2159
  %v2161 = vrcp.pop %v2146
  %v2162 = vmul.f32 %v2130, %v2161
  %v2163 = vrcp.pop %v2148
  %v2164 = vmul.f32 %v2132, %v2163
  %v2165 = vrcp.pop %v2150
  %v2166 = vmul.f32 %v2134, %v2165
  %v2167 = vrcp.pop %v2152
  %v2168 = vmul.f32 %v2136, %v2167
  %v2169 = vrcp.pop %v2154
  %v2170 = vmul.f32 %v2138, %v2169
  %v2171 = vrcp.pop %v2156
  %v2172 = vmul.f32 %v2140, %v2171
  %v2173 = vrcp.pop %v2158
  %v2174 = vmul.f32 %v2142, %v2173
  %v2175 = vrcp.pop %v2160
  %v2176 = vmul.f32 %v2144, %v2175
  %2177 = vst [vmem:[%s10] sm:$0xff] %v2162
  %2178 = vst [vmem:[%s10 + $0x8] sm:$0xff] %v2164
  %2179 = vst [vmem:[%s10 + $0x10] sm:$0xff] %v2166
  %2180 = vst [vmem:[%s10 + $0x18] sm:$0xff] %v2168
  %2181 = vst [vmem:[%s10 + $0x20] sm:$0xff] %v2170
  %2182 = vst [vmem:[%s10 + $0x28] sm:$0xff] %v2172
  %2183 = vst [vmem:[%s10 + $0x30] sm:$0xff] %v2174
  %2184 = vst [vmem:[%s10 + $0x38] sm:$0xff] %v2176
  // Predicated region
  $region42: #{seq2seq_forward.1} parent=0 // pred_check
    _
  $region43: #{seq2seq_forward.1} parent=0 // pred_check_branch
    %2186 = sbr.rel (0) target = $region45
  $region44: #{seq2seq_forward.1} parent=0 // pred_region
    _
  $region45: #{seq2seq_forward.1} parent=0 // pred_fallthru
    _
  // Predicated region
  $region46: #{seq2seq_forward.1} parent=0 // pred_check
    _
  $region47: #{seq2seq_forward.1} parent=0 // pred_check_branch
    %2188 = sbr.rel (0) target = $region49
  $region48: #{seq2seq_forward.1} parent=0 // pred_region
    _
  $region49: #{seq2seq_forward.1} parent=0 // pred_fallthru
    _

</llo_original>
